<compile_context>
chip_gen: v5e
topology: v5e:2x2
jax: 0.10.0
libtpu: 0.0.40
codegen_flags: <defaults>
</compile_context>

<pallas_src>
import jax
import jax.numpy as jnp
from jax.experimental import pallas as pl
from jax.experimental.pallas import tpu as pltpu


# ---------------------------------------------------------------------------
# Fused kernel: attention gate + cnn1 + tanh + maxpool + relu + FM head
# ---------------------------------------------------------------------------
def _senti_attn_kernel(b_att_ref,                          # SMEM (1, 1)
                       xup_ref, xun_ref, xip_ref, xin_ref,  # (TB, I, E) each
                       w_att_ref,                          # (4, I, E)  f32
                       w1_ref, b1_ref,                     # (E, C), (1, C)
                       oe_ref, bias_ref,                   # (TB, 2D), (TB, 1)
                       w12_ref,                            # (N, 1+K) = [V1 | V2]
                       v2sqs_ref,                          # (N, 1)   = rowsum(V2^2)
                       o_ref):                             # (1, 1, TB)
    TB, I, E = xup_ref.shape
    C = w1_ref.shape[1]

    w1 = w1_ref[...]
    w_att = w_att_ref[...]
    xs = (xup_ref, xun_ref, xip_ref, xin_ref)

    # --- 4 review blocks: MXU pre-activation -> RUNNING max; gate partial sums
    logit = jnp.zeros((TB, 1), jnp.float32) + b_att_ref[0, 0]
    hmax = None
    for k in range(4):
        x = xs[k][...]                                     # (TB, I, E)
        h = jnp.dot(x.reshape(TB * I, E), w1,
                    preferred_element_type=jnp.float32).reshape(TB, I, C)
        hk = jnp.max(h, axis=1)                            # (TB, C)
        hmax = hk if hmax is None else jnp.maximum(hmax, hk)
        # attention-gate contribution (VPU/XLU work, hidden under the MXU stream)
        g = jnp.sum(x.astype(jnp.float32) * w_att[k][None],
                    axis=2, keepdims=True)                 # (TB, I, 1)
        logit = logit + jnp.sum(g, axis=1)                 # (TB, 1)

    # --- gate + tanh hoisted out of the max-pool (score > 0, tanh monotone) --
    score = jax.nn.sigmoid(logit)                          # (TB, 1)
    ui = jnp.maximum(jnp.tanh(score * hmax + b1_ref[...]), 0.0)   # (TB, C)

    # --- FM head: z = [ui | user_emb | item_emb], two tiny dots ---------------
    z = jnp.concatenate([ui, oe_ref[...]], axis=1)         # (TB, N)
    a = jnp.dot(z, w12_ref[...], preferred_element_type=jnp.float32)   # (TB, 1+K)
    one = a[:, 0:1]                                        # z @ V1
    sum_out1_sq = jnp.sum(a * a, axis=1, keepdims=True) - one * one    # sum_k (z@V2)_k^2
    sum_out2 = jnp.dot(z * z, v2sqs_ref[...],
                       preferred_element_type=jnp.float32)              # (TB, 1)
    res = one + 0.5 * (sum_out1_sq - sum_out2) + bias_ref[...]          # (TB, 1)

    # --- lane-dense store: (TB, 1) column -> (1, TB) row ----------------------
    # (iota-mask + sublane reduce; O(TB^2) VPU work stays tiny for TB <= 512)
    rows = jax.lax.broadcasted_iota(jnp.int32, (TB, TB), 0)
    cols = jax.lax.broadcasted_iota(jnp.int32, (TB, TB), 1)
    row = jnp.sum(jnp.where(rows == cols, res, 0.0), axis=0, keepdims=True)  # (1, TB)
    o_ref[...] = row[None]                                 # (1, 1, TB)


# ---------------------------------------------------------------------------
# Tiling helpers
# ---------------------------------------------------------------------------
def _round_up(x, m):
    return (x + m - 1) // m * m


def _choose_block_b(B, I, E, D, target=256, vmem_budget_bytes=40 * 1024 * 1024):
    """Batch-tile size: large enough to amortize the ~0.35us/grid-step overhead,
    a multiple of 8 (sublane), bounded by a double-buffered VMEM budget, and
    small enough to keep >= 2 grid steps once B exceeds one tile (v7x has
    2 TensorCores).  On v6e/v5e (128 MiB VMEM, single TC) `target` can be
    pushed to 512-1024."""
    per_row_bytes = 2 * 4 * (4 * I * E + 2 * D + 1)        # double-buffered f32 inputs
    cap = max(8, (vmem_budget_bytes // max(per_row_bytes, 1)) // 8 * 8)
    bb = min(target, cap)
    if B <= 8:
        return 8
    return max(8, min(bb, _round_up((B + 1) // 2, 8)))


# ---------------------------------------------------------------------------
# Full SentiAttn forward (embedding gathers / reshapes in plain JAX glue)
# ---------------------------------------------------------------------------
def senti_attn_forward(params, user_id, item_id,
                       x_user_pos, x_user_neg, x_item_pos, x_item_neg,
                       *, block_b=None, cast_to_bf16=False):
    B, I, E = x_user_pos.shape
    C = params["w1_t"].shape[1]
    D = params["user_emb"].shape[1]
    K = params["V2"].shape[1]
    N = C + 2 * D
    assert params["V1"].shape[0] == N

    if block_b is None:
        block_b = _choose_block_b(B, I, E, D)
    block_b = max(8, _round_up(block_b, 8))
    n_steps = (B + block_b - 1) // block_b
    b_pad = n_steps * block_b

    def pad_b(a):
        if a.shape[0] == b_pad:
            return a
        return jnp.pad(a, [(0, b_pad - a.shape[0])] + [(0, 0)] * (a.ndim - 1))

    xs = [x_user_pos, x_user_neg, x_item_pos, x_item_neg]
    w1 = params["w1_t"]
    if cast_to_bf16:   # halve the dominant HBM stream; dots still accumulate in f32
        xs = [x.astype(jnp.bfloat16) for x in xs]
        w1 = w1.astype(jnp.bfloat16)
    xs = [pad_b(x) for x in xs]

    # layout plumbing (cheap, done once per call in the wrapper)
    w_att4 = params["w_att"].reshape(4, I, E).astype(jnp.float32)    # per-block gate weights
    oe = jnp.concatenate([params["user_emb"][user_id],
                          params["item_emb"][item_id]], axis=1)      # (B, 2D)
    bias = (params["user_bias"][user_id] + params["item_bias"][item_id]
            + params["global_bias"][0, 0])                           # (B, 1)
    oe, bias = pad_b(oe), pad_b(bias)
    w12 = jnp.concatenate([params["V1"], params["V2"]], axis=1)      # (N, 1+K)
    v2sq_sum = jnp.sum(params["V2"] * params["V2"], axis=1, keepdims=True)  # (N, 1)

    fused = pl.pallas_call(
        _senti_attn_kernel,
        out_shape=jax.ShapeDtypeStruct((n_steps, 1, block_b), jnp.float32),
        grid=(n_steps,),
        in_specs=[
            pl.BlockSpec((1, 1), lambda b: (0, 0),
                         memory_space=pltpu.MemorySpace.SMEM),       # b_att (scalar)
            pl.BlockSpec((block_b, I, E), lambda b: (b, 0, 0)),      # x_user_pos
            pl.BlockSpec((block_b, I, E), lambda b: (b, 0, 0)),      # x_user_neg
            pl.BlockSpec((block_b, I, E), lambda b: (b, 0, 0)),      # x_item_pos
            pl.BlockSpec((block_b, I, E), lambda b: (b, 0, 0)),      # x_item_neg
            pl.BlockSpec((4, I, E), lambda b: (0, 0, 0)),            # w_att (4,I,E)
            pl.BlockSpec((E, C), lambda b: (0, 0)),                  # w1_t
            pl.BlockSpec((1, C), lambda b: (0, 0)),                  # b1
            pl.BlockSpec((block_b, 2 * D), lambda b: (b, 0)),        # [user|item] emb
            pl.BlockSpec((block_b, 1), lambda b: (b, 0)),            # folded bias
            pl.BlockSpec((N, 1 + K), lambda b: (0, 0)),              # [V1 | V2]
            pl.BlockSpec((N, 1), lambda b: (0, 0)),                  # rowsum(V2^2)
        ],
        out_specs=pl.BlockSpec((1, 1, block_b), lambda b: (b, 0, 0)),
        compiler_params=pltpu.CompilerParams(
            dimension_semantics=("parallel",),
            vmem_limit_bytes=48 * 1024 * 1024,
        ),
    )
    out = fused(params["b_att"], *xs, w_att4, w1, params["b1"],
                oe, bias, w12, v2sq_sum)
    return out.reshape(-1)[:B].reshape(B, 1)


# Pure-JAX reference (matches the PyTorch forward) for verification.
def senti_attn_reference(params, user_id, item_id,
                         x_user_pos, x_user_neg, x_item_pos, x_item_neg):
    x = jnp.concatenate([x_user_pos, x_user_neg, x_item_pos, x_item_neg], axis=1)
    score = jax.nn.sigmoid(
        jnp.sum(x * params["w_att"][None], axis=(1, 2), keepdims=True)
        + params["b_att"][0, 0])                                     # (B,1,1)
    xs = x * score
    h = jnp.tanh(jnp.einsum("bse,ec->bsc", xs, params["w1_t"]) + params["b1"])
    user_item = jnp.maximum(jnp.max(h, axis=1), 0.0)                 # (B, C)
    user_emb = params["user_emb"][user_id]
    item_emb = params["item_emb"][item_id]
    z = jnp.concatenate([user_item, user_emb, item_emb], axis=1)
    one = z @ params["V1"]
    out_1 = z @ params["V2"]
    out_2 = (z ** 2) @ (params["V2"] ** 2)
    out_3 = 0.5 * (out_1 ** 2 - out_2)
    out = one + jnp.sum(out_3, axis=1, keepdims=True) + params["global_bias"][0, 0]
    return out + params["user_bias"][user_id] + params["item_bias"][item_id]


if __name__ == "__main__":
    # Small, self-consistent shapes (module invariant: channels + 2*emb_dim = latent_v_len)
    B = 2
    input_size = 8          # rows per review block
    E = 32                  # embed_size
    C = 16                  # channels (attention out_channels)
    emb_dim = 8             # user/item embedding dim
    N = C + 2 * emb_dim     # latent_v_len = 32
    K = 8                   # fm_k
    S = 4 * input_size      # rows after concat of 4 blocks
    num_users, num_items = 10, 10

    key = jax.random.PRNGKey(0)
    ks = jax.random.split(key, 12)

    params = {
        # Attention(4*input_size, E, C) parameters
        "w_att": 0.05 * jax.random.normal(ks[0], (S, E), jnp.float32),
        "b_att": 0.05 * jax.random.normal(ks[1], (1, 1), jnp.float32),
        "w1_t":  0.05 * jax.random.normal(ks[2], (E, C), jnp.float32),   # (E, C)
        "b1":    0.05 * jax.random.normal(ks[3], (1, C), jnp.float32),
        # embeddings (module: normal(0, 0.1)) and zero biases
        "user_emb": 0.1 * jax.random.normal(ks[4], (num_users + 1, emb_dim), jnp.float32),
        "item_emb": 0.1 * jax.random.normal(ks[5], (num_items + 1, emb_dim), jnp.float32),
        "user_bias": jnp.zeros((num_users + 1, 1), jnp.float32),
        "item_bias": jnp.zeros((num_items + 1, 1), jnp.float32),
        # TorchFM parameters (uniform(-0.1, 0.1), zero global bias)
        "V1": jax.random.uniform(ks[6], (N, 1), jnp.float32, -0.1, 0.1),
        "V2": jax.random.uniform(ks[7], (N, K), jnp.float32, -0.1, 0.1),
        "global_bias": jnp.zeros((1, 1), jnp.float32),
    }

    user_id = jnp.array([1, 3], dtype=jnp.int32)
    item_id = jnp.array([2, 7], dtype=jnp.int32)
    x_user_pos = jax.random.normal(ks[8],  (B, input_size, E), jnp.float32)
    x_user_neg = jax.random.normal(ks[9],  (B, input_size, E), jnp.float32)
    x_item_pos = jax.random.normal(ks[10], (B, input_size, E), jnp.float32)
    x_item_neg = jax.random.normal(ks[11], (B, input_size, E), jnp.float32)

    out = senti_attn_forward(params, user_id, item_id,
                             x_user_pos, x_user_neg, x_item_pos, x_item_neg)
    out = jax.block_until_ready(out)

    ref = senti_attn_reference(params, user_id, item_id,
                               x_user_pos, x_user_neg, x_item_pos, x_item_neg)
    assert out.shape == (B, 1)
    assert jnp.allclose(out, ref, atol=1e-5, rtol=1e-5), (out, ref)

    print("KERNEL_OK")
</pallas_src>

<mosaic_0001>
module attributes {stable_mosaic.version = 11 : i64} {
  func.func @_senti_attn_kernel(%arg0: i32, %arg1: memref<1x1xf32, #tpu.memory_space<smem>>, %arg2: memref<8x8x32xf32, #tpu.memory_space<vmem>>, %arg3: memref<8x8x32xf32, #tpu.memory_space<vmem>>, %arg4: memref<8x8x32xf32, #tpu.memory_space<vmem>>, %arg5: memref<8x8x32xf32, #tpu.memory_space<vmem>>, %arg6: memref<4x8x32xf32, #tpu.memory_space<vmem>>, %arg7: memref<32x16xf32, #tpu.memory_space<vmem>>, %arg8: memref<1x16xf32, #tpu.memory_space<vmem>>, %arg9: memref<8x16xf32, #tpu.memory_space<vmem>>, %arg10: memref<8x1xf32, #tpu.memory_space<vmem>>, %arg11: memref<32x9xf32, #tpu.memory_space<vmem>>, %arg12: memref<32x1xf32, #tpu.memory_space<vmem>>, %arg13: memref<1x1x8xf32, #tpu.memory_space<vmem>>) attributes {dimension_semantics = [#tpu.dimension_semantics<parallel>], iteration_bounds = array<i64: 1>, scalar_prefetch = 0 : i64, scratch_operands = 0 : i64, tpu.core_type = #tpu.core_type<tc>, window_params = [{transform_indices = @transform_0, window_bounds = array<i64: 1, 1>}, {transform_indices = @transform_1, window_bounds = array<i64: 8, 8, 32>}, {transform_indices = @transform_2, window_bounds = array<i64: 8, 8, 32>}, {transform_indices = @transform_3, window_bounds = array<i64: 8, 8, 32>}, {transform_indices = @transform_4, window_bounds = array<i64: 8, 8, 32>}, {pipeline_mode = #tpu.pipeline_mode<synchronous>, transform_indices = @transform_5, window_bounds = array<i64: 4, 8, 32>}, {pipeline_mode = #tpu.pipeline_mode<synchronous>, transform_indices = @transform_6, window_bounds = array<i64: 32, 16>}, {pipeline_mode = #tpu.pipeline_mode<synchronous>, transform_indices = @transform_7, window_bounds = array<i64: 1, 16>}, {transform_indices = @transform_8, window_bounds = array<i64: 8, 16>}, {transform_indices = @transform_9, window_bounds = array<i64: 8, 1>}, {pipeline_mode = #tpu.pipeline_mode<synchronous>, transform_indices = @transform_10, window_bounds = array<i64: 32, 9>}, {pipeline_mode = #tpu.pipeline_mode<synchronous>, transform_indices = @transform_11, window_bounds = array<i64: 32, 1>}, {transform_indices = @transform_12, window_bounds = array<i64: 1, 1, 8>}]} {
    %c0 = arith.constant 0 : index
    %c0_0 = arith.constant 0 : index
    %0 = vector.load %arg7[%c0, %c0_0] : memref<32x16xf32, #tpu.memory_space<vmem>>, vector<32x16xf32>
    %c0_1 = arith.constant 0 : index
    %c0_2 = arith.constant 0 : index
    %c0_3 = arith.constant 0 : index
    %1 = vector.load %arg6[%c0_1, %c0_2, %c0_3] : memref<4x8x32xf32, #tpu.memory_space<vmem>>, vector<4x8x32xf32>
    %cst = arith.constant 0.000000e+00 : f32
    %2 = vector.broadcast %cst : f32 to vector<8x1xf32>
    %c0_4 = arith.constant 0 : index
    %c0_5 = arith.constant 0 : index
    %3 = memref.load %arg1[%c0_4, %c0_5] : memref<1x1xf32, #tpu.memory_space<smem>>
    %4 = vector.broadcast %3 : f32 to vector<8x1xf32>
    %5 = arith.addf %2, %4 : vector<8x1xf32>
    %c0_6 = arith.constant 0 : index
    %c0_7 = arith.constant 0 : index
    %c0_8 = arith.constant 0 : index
    %6 = vector.load %arg2[%c0_6, %c0_7, %c0_8] : memref<8x8x32xf32, #tpu.memory_space<vmem>>, vector<8x8x32xf32>
    %7 = vector.shape_cast %6 : vector<8x8x32xf32> to vector<64x32xf32>
    %cst_9 = arith.constant dense<0.000000e+00> : vector<64x16xf32>
    %8 = tpu.matmul %7, %0, %cst_9 {dimension_numbers = #tpu.dot_dimension_numbers<[1], [0], [0], [1], [0, 0, 1, 1], [], []>} : vector<64x32xf32>, vector<32x16xf32>, vector<64x16xf32> -> vector<64x16xf32>
    %9 = vector.shape_cast %8 : vector<64x16xf32> to vector<8x8x16xf32>
    %cst_10 = arith.constant dense<0xFF800000> : vector<8x16xf32>
    %10 = vector.multi_reduction <maximumf>, %9, %cst_10 [1] : vector<8x8x16xf32> to vector<8x16xf32>
    %11 = vector.extract_strided_slice %1 {offsets = [0, 0, 0], sizes = [1, 8, 32], strides = [1, 1, 1]} : vector<4x8x32xf32> to vector<1x8x32xf32>
    %12 = vector.shape_cast %11 : vector<1x8x32xf32> to vector<8x32xf32>
    %13 = vector.shape_cast %12 : vector<8x32xf32> to vector<1x8x32xf32>
    %14 = vector.broadcast %13 : vector<1x8x32xf32> to vector<8x8x32xf32>
    %15 = arith.mulf %6, %14 : vector<8x8x32xf32>
    %cst_11 = arith.constant dense<0.000000e+00> : vector<8x8xf32>
    %16 = vector.multi_reduction <add>, %15, %cst_11 [2] : vector<8x8x32xf32> to vector<8x8xf32>
    %17 = vector.shape_cast %16 : vector<8x8xf32> to vector<8x8x1xf32>
    %cst_12 = arith.constant dense<0.000000e+00> : vector<8x1xf32>
    %18 = vector.multi_reduction <add>, %17, %cst_12 [1] : vector<8x8x1xf32> to vector<8x1xf32>
    %19 = arith.addf %5, %18 : vector<8x1xf32>
    %c0_13 = arith.constant 0 : index
    %c0_14 = arith.constant 0 : index
    %c0_15 = arith.constant 0 : index
    %20 = vector.load %arg3[%c0_13, %c0_14, %c0_15] : memref<8x8x32xf32, #tpu.memory_space<vmem>>, vector<8x8x32xf32>
    %21 = vector.shape_cast %20 : vector<8x8x32xf32> to vector<64x32xf32>
    %cst_16 = arith.constant dense<0.000000e+00> : vector<64x16xf32>
    %22 = tpu.matmul %21, %0, %cst_16 {dimension_numbers = #tpu.dot_dimension_numbers<[1], [0], [0], [1], [0, 0, 1, 1], [], []>} : vector<64x32xf32>, vector<32x16xf32>, vector<64x16xf32> -> vector<64x16xf32>
    %23 = vector.shape_cast %22 : vector<64x16xf32> to vector<8x8x16xf32>
    %cst_17 = arith.constant dense<0xFF800000> : vector<8x16xf32>
    %24 = vector.multi_reduction <maximumf>, %23, %cst_17 [1] : vector<8x8x16xf32> to vector<8x16xf32>
    %25 = arith.maximumf %10, %24 : vector<8x16xf32>
    %26 = vector.extract_strided_slice %1 {offsets = [1, 0, 0], sizes = [1, 8, 32], strides = [1, 1, 1]} : vector<4x8x32xf32> to vector<1x8x32xf32>
    %27 = vector.shape_cast %26 : vector<1x8x32xf32> to vector<8x32xf32>
    %28 = vector.shape_cast %27 : vector<8x32xf32> to vector<1x8x32xf32>
    %29 = vector.broadcast %28 : vector<1x8x32xf32> to vector<8x8x32xf32>
    %30 = arith.mulf %20, %29 : vector<8x8x32xf32>
    %cst_18 = arith.constant dense<0.000000e+00> : vector<8x8xf32>
    %31 = vector.multi_reduction <add>, %30, %cst_18 [2] : vector<8x8x32xf32> to vector<8x8xf32>
    %32 = vector.shape_cast %31 : vector<8x8xf32> to vector<8x8x1xf32>
    %cst_19 = arith.constant dense<0.000000e+00> : vector<8x1xf32>
    %33 = vector.multi_reduction <add>, %32, %cst_19 [1] : vector<8x8x1xf32> to vector<8x1xf32>
    %34 = arith.addf %19, %33 : vector<8x1xf32>
    %c0_20 = arith.constant 0 : index
    %c0_21 = arith.constant 0 : index
    %c0_22 = arith.constant 0 : index
    %35 = vector.load %arg4[%c0_20, %c0_21, %c0_22] : memref<8x8x32xf32, #tpu.memory_space<vmem>>, vector<8x8x32xf32>
    %36 = vector.shape_cast %35 : vector<8x8x32xf32> to vector<64x32xf32>
    %cst_23 = arith.constant dense<0.000000e+00> : vector<64x16xf32>
    %37 = tpu.matmul %36, %0, %cst_23 {dimension_numbers = #tpu.dot_dimension_numbers<[1], [0], [0], [1], [0, 0, 1, 1], [], []>} : vector<64x32xf32>, vector<32x16xf32>, vector<64x16xf32> -> vector<64x16xf32>
    %38 = vector.shape_cast %37 : vector<64x16xf32> to vector<8x8x16xf32>
    %cst_24 = arith.constant dense<0xFF800000> : vector<8x16xf32>
    %39 = vector.multi_reduction <maximumf>, %38, %cst_24 [1] : vector<8x8x16xf32> to vector<8x16xf32>
    %40 = arith.maximumf %25, %39 : vector<8x16xf32>
    %41 = vector.extract_strided_slice %1 {offsets = [2, 0, 0], sizes = [1, 8, 32], strides = [1, 1, 1]} : vector<4x8x32xf32> to vector<1x8x32xf32>
    %42 = vector.shape_cast %41 : vector<1x8x32xf32> to vector<8x32xf32>
    %43 = vector.shape_cast %42 : vector<8x32xf32> to vector<1x8x32xf32>
    %44 = vector.broadcast %43 : vector<1x8x32xf32> to vector<8x8x32xf32>
    %45 = arith.mulf %35, %44 : vector<8x8x32xf32>
    %cst_25 = arith.constant dense<0.000000e+00> : vector<8x8xf32>
    %46 = vector.multi_reduction <add>, %45, %cst_25 [2] : vector<8x8x32xf32> to vector<8x8xf32>
    %47 = vector.shape_cast %46 : vector<8x8xf32> to vector<8x8x1xf32>
    %cst_26 = arith.constant dense<0.000000e+00> : vector<8x1xf32>
    %48 = vector.multi_reduction <add>, %47, %cst_26 [1] : vector<8x8x1xf32> to vector<8x1xf32>
    %49 = arith.addf %34, %48 : vector<8x1xf32>
    %c0_27 = arith.constant 0 : index
    %c0_28 = arith.constant 0 : index
    %c0_29 = arith.constant 0 : index
    %50 = vector.load %arg5[%c0_27, %c0_28, %c0_29] : memref<8x8x32xf32, #tpu.memory_space<vmem>>, vector<8x8x32xf32>
    %51 = vector.shape_cast %50 : vector<8x8x32xf32> to vector<64x32xf32>
    %cst_30 = arith.constant dense<0.000000e+00> : vector<64x16xf32>
    %52 = tpu.matmul %51, %0, %cst_30 {dimension_numbers = #tpu.dot_dimension_numbers<[1], [0], [0], [1], [0, 0, 1, 1], [], []>} : vector<64x32xf32>, vector<32x16xf32>, vector<64x16xf32> -> vector<64x16xf32>
    %53 = vector.shape_cast %52 : vector<64x16xf32> to vector<8x8x16xf32>
    %cst_31 = arith.constant dense<0xFF800000> : vector<8x16xf32>
    %54 = vector.multi_reduction <maximumf>, %53, %cst_31 [1] : vector<8x8x16xf32> to vector<8x16xf32>
    %55 = arith.maximumf %40, %54 : vector<8x16xf32>
    %56 = vector.extract_strided_slice %1 {offsets = [3, 0, 0], sizes = [1, 8, 32], strides = [1, 1, 1]} : vector<4x8x32xf32> to vector<1x8x32xf32>
    %57 = vector.shape_cast %56 : vector<1x8x32xf32> to vector<8x32xf32>
    %58 = vector.shape_cast %57 : vector<8x32xf32> to vector<1x8x32xf32>
    %59 = vector.broadcast %58 : vector<1x8x32xf32> to vector<8x8x32xf32>
    %60 = arith.mulf %50, %59 : vector<8x8x32xf32>
    %cst_32 = arith.constant dense<0.000000e+00> : vector<8x8xf32>
    %61 = vector.multi_reduction <add>, %60, %cst_32 [2] : vector<8x8x32xf32> to vector<8x8xf32>
    %62 = vector.shape_cast %61 : vector<8x8xf32> to vector<8x8x1xf32>
    %cst_33 = arith.constant dense<0.000000e+00> : vector<8x1xf32>
    %63 = vector.multi_reduction <add>, %62, %cst_33 [1] : vector<8x8x1xf32> to vector<8x1xf32>
    %64 = arith.addf %49, %63 : vector<8x1xf32>
    %65 = arith.negf %64 : vector<8x1xf32>
    %66 = math.exp %65 : vector<8x1xf32>
    %cst_34 = arith.constant 1.000000e+00 : f32
    %67 = vector.broadcast %cst_34 : f32 to vector<8x1xf32>
    %68 = arith.addf %67, %66 : vector<8x1xf32>
    %69 = arith.divf %67, %68 : vector<8x1xf32>
    %70 = vector.broadcast %69 : vector<8x1xf32> to vector<8x16xf32>
    %71 = arith.mulf %70, %55 : vector<8x16xf32>
    %c0_35 = arith.constant 0 : index
    %c0_36 = arith.constant 0 : index
    %72 = vector.load %arg8[%c0_35, %c0_36] : memref<1x16xf32, #tpu.memory_space<vmem>>, vector<1x16xf32>
    %73 = vector.broadcast %72 : vector<1x16xf32> to vector<8x16xf32>
    %74 = arith.addf %71, %73 : vector<8x16xf32>
    %75 = math.tanh %74 : vector<8x16xf32>
    %cst_37 = arith.constant 0.000000e+00 : f32
    %76 = vector.broadcast %cst_37 : f32 to vector<8x16xf32>
    %77 = arith.maximumf %75, %76 : vector<8x16xf32>
    %c0_38 = arith.constant 0 : index
    %c0_39 = arith.constant 0 : index
    %78 = vector.load %arg9[%c0_38, %c0_39] : memref<8x16xf32, #tpu.memory_space<vmem>>, vector<8x16xf32>
    %79 = tpu.concatenate %77, %78 in 1 : vector<8x16xf32>, vector<8x16xf32> -> vector<8x32xf32>
    %c0_40 = arith.constant 0 : index
    %c0_41 = arith.constant 0 : index
    %80 = vector.load %arg11[%c0_40, %c0_41] : memref<32x9xf32, #tpu.memory_space<vmem>>, vector<32x9xf32>
    %cst_42 = arith.constant dense<0.000000e+00> : vector<8x9xf32>
    %81 = tpu.matmul %79, %80, %cst_42 {dimension_numbers = #tpu.dot_dimension_numbers<[1], [0], [0], [1], [0, 0, 1, 1], [], []>} : vector<8x32xf32>, vector<32x9xf32>, vector<8x9xf32> -> vector<8x9xf32>
    %82 = vector.extract_strided_slice %81 {offsets = [0, 0], sizes = [8, 1], strides = [1, 1]} : vector<8x9xf32> to vector<8x1xf32>
    %83 = arith.mulf %81, %81 : vector<8x9xf32>
    %cst_43 = arith.constant dense<0.000000e+00> : vector<8xf32>
    %84 = vector.multi_reduction <add>, %83, %cst_43 [1] : vector<8x9xf32> to vector<8xf32>
    %85 = vector.shape_cast %84 : vector<8xf32> to vector<8x1xf32>
    %86 = arith.mulf %82, %82 : vector<8x1xf32>
    %87 = arith.subf %85, %86 : vector<8x1xf32>
    %88 = arith.mulf %79, %79 : vector<8x32xf32>
    %c0_44 = arith.constant 0 : index
    %c0_45 = arith.constant 0 : index
    %89 = vector.load %arg12[%c0_44, %c0_45] : memref<32x1xf32, #tpu.memory_space<vmem>>, vector<32x1xf32>
    %cst_46 = arith.constant dense<0.000000e+00> : vector<8x1xf32>
    %90 = tpu.matmul %88, %89, %cst_46 {dimension_numbers = #tpu.dot_dimension_numbers<[1], [0], [0], [1], [0, 0, 1, 1], [], []>} : vector<8x32xf32>, vector<32x1xf32>, vector<8x1xf32> -> vector<8x1xf32>
    %91 = arith.subf %87, %90 : vector<8x1xf32>
    %cst_47 = arith.constant 5.000000e-01 : f32
    %92 = vector.broadcast %cst_47 : f32 to vector<8x1xf32>
    %93 = arith.mulf %92, %91 : vector<8x1xf32>
    %94 = arith.addf %82, %93 : vector<8x1xf32>
    %c0_48 = arith.constant 0 : index
    %c0_49 = arith.constant 0 : index
    %95 = vector.load %arg10[%c0_48, %c0_49] : memref<8x1xf32, #tpu.memory_space<vmem>>, vector<8x1xf32>
    %96 = arith.addf %94, %95 : vector<8x1xf32>
    %97 = tpu.iota {dimensions = array<i32: 0>} : vector<8x8xi32>
    %98 = tpu.iota {dimensions = array<i32: 1>} : vector<8x8xi32>
    %99 = arith.cmpi eq, %97, %98 : vector<8x8xi32>
    %cst_50 = arith.constant 0.000000e+00 : f32
    %100 = vector.shape_cast %96 : vector<8x1xf32> to vector<8x1xf32>
    %101 = vector.broadcast %100 : vector<8x1xf32> to vector<8x8xf32>
    %102 = vector.broadcast %cst_50 : f32 to vector<8x8xf32>
    %103 = arith.select %99, %101, %102 : vector<8x8xi1>, vector<8x8xf32>
    %cst_51 = arith.constant dense<0.000000e+00> : vector<8xf32>
    %104 = vector.multi_reduction <add>, %103, %cst_51 [0] : vector<8x8xf32> to vector<8xf32>
    %105 = vector.shape_cast %104 : vector<8xf32> to vector<1x8xf32>
    %106 = vector.shape_cast %105 : vector<1x8xf32> to vector<1x1x8xf32>
    %c0_52 = arith.constant 0 : index
    %c0_53 = arith.constant 0 : index
    %c0_54 = arith.constant 0 : index
    %107 = vector.load %arg13[%c0_52, %c0_53, %c0_54] : memref<1x1x8xf32, #tpu.memory_space<vmem>>, vector<1x1x8xf32>
    tpu.vector_store %arg13[%c0_52, %c0_53, %c0_54], %106 {strides = array<i32>} : memref<1x1x8xf32, #tpu.memory_space<vmem>>, vector<1x1x8xf32>,
    return
  }
  func.func @transform_0(%arg0: i32) -> (i32, i32) {
    %c0_i32 = arith.constant 0 : i32
    %c0_i32_0 = arith.constant 0 : i32
    %c0_i32_1 = arith.constant 0 : i32
    return %c0_i32, %c0_i32_0 : i32, i32
  }
  func.func @transform_1(%arg0: i32) -> (i32, i32, i32) {
    %c0_i32 = arith.constant 0 : i32
    %c0_i32_0 = arith.constant 0 : i32
    %c0_i32_1 = arith.constant 0 : i32
    return %arg0, %c0_i32, %c0_i32_0 : i32, i32, i32
  }
  func.func @transform_2(%arg0: i32) -> (i32, i32, i32) {
    %c0_i32 = arith.constant 0 : i32
    %c0_i32_0 = arith.constant 0 : i32
    %c0_i32_1 = arith.constant 0 : i32
    return %arg0, %c0_i32, %c0_i32_0 : i32, i32, i32
  }
  func.func @transform_3(%arg0: i32) -> (i32, i32, i32) {
    %c0_i32 = arith.constant 0 : i32
    %c0_i32_0 = arith.constant 0 : i32
    %c0_i32_1 = arith.constant 0 : i32
    return %arg0, %c0_i32, %c0_i32_0 : i32, i32, i32
  }
  func.func @transform_4(%arg0: i32) -> (i32, i32, i32) {
    %c0_i32 = arith.constant 0 : i32
    %c0_i32_0 = arith.constant 0 : i32
    %c0_i32_1 = arith.constant 0 : i32
    return %arg0, %c0_i32, %c0_i32_0 : i32, i32, i32
  }
  func.func @transform_5(%arg0: i32) -> (i32, i32, i32) {
    %c0_i32 = arith.constant 0 : i32
    %c0_i32_0 = arith.constant 0 : i32
    %c0_i32_1 = arith.constant 0 : i32
    %c0_i32_2 = arith.constant 0 : i32
    return %c0_i32, %c0_i32_0, %c0_i32_1 : i32, i32, i32
  }
  func.func @transform_6(%arg0: i32) -> (i32, i32) {
    %c0_i32 = arith.constant 0 : i32
    %c0_i32_0 = arith.constant 0 : i32
    %c0_i32_1 = arith.constant 0 : i32
    return %c0_i32, %c0_i32_0 : i32, i32
  }
  func.func @transform_7(%arg0: i32) -> (i32, i32) {
    %c0_i32 = arith.constant 0 : i32
    %c0_i32_0 = arith.constant 0 : i32
    %c0_i32_1 = arith.constant 0 : i32
    return %c0_i32, %c0_i32_0 : i32, i32
  }
  func.func @transform_8(%arg0: i32) -> (i32, i32) {
    %c0_i32 = arith.constant 0 : i32
    %c0_i32_0 = arith.constant 0 : i32
    return %arg0, %c0_i32 : i32, i32
  }
  func.func @transform_9(%arg0: i32) -> (i32, i32) {
    %c0_i32 = arith.constant 0 : i32
    %c0_i32_0 = arith.constant 0 : i32
    return %arg0, %c0_i32 : i32, i32
  }
  func.func @transform_10(%arg0: i32) -> (i32, i32) {
    %c0_i32 = arith.constant 0 : i32
    %c0_i32_0 = arith.constant 0 : i32
    %c0_i32_1 = arith.constant 0 : i32
    return %c0_i32, %c0_i32_0 : i32, i32
  }
  func.func @transform_11(%arg0: i32) -> (i32, i32) {
    %c0_i32 = arith.constant 0 : i32
    %c0_i32_0 = arith.constant 0 : i32
    %c0_i32_1 = arith.constant 0 : i32
    return %c0_i32, %c0_i32_0 : i32, i32
  }
  func.func @transform_12(%arg0: i32) -> (i32, i32, i32) {
    %c0_i32 = arith.constant 0 : i32
    %c0_i32_0 = arith.constant 0 : i32
    %c0_i32_1 = arith.constant 0 : i32
    return %arg0, %c0_i32, %c0_i32_0 : i32, i32, i32
  }
}

</mosaic_0001>

<llo_original>
// kernel: tpu_custom_call.1
$region0: #{tpu_custom_call.1}
  #allocation0 [shape = 'u32[]', space=smem, size = 0x4, offset = 0x4, fixed_abs, tag = 'smem constant byte address 0x4 - core index']
  #allocation1 [shape = 'u32[72,128]{1,0:T(1,128)}', space=vmem, size = 0x9000, scoped, tag = 'internal scratch']
  #allocation2 [shape = 'f32[1,1]{1,0:T(1,128)S(6)}', space=smem, size = 0x200, scoped, tag = 'scoped memory for tpu_custom_call.1']
  %s0 = inlined_call_operand.<no memory space> [shape: f32[1,1], index: 0, kind: input, shape index: {}]
  %s1 = inlined_call_operand.vmem [shape: f32[8,8,32], index: 1, kind: input, shape index: {}]
  %s2 = inlined_call_operand.hbm [shape: f32[8,8,32], index: 2, kind: input, shape index: {}]
  %s3 = inlined_call_operand.hbm [shape: f32[8,8,32], index: 3, kind: input, shape index: {}]
  %s4 = inlined_call_operand.hbm [shape: f32[8,8,32], index: 4, kind: input, shape index: {}]
  %s5 = inlined_call_operand.vmem [shape: f32[4,8,32], index: 5, kind: input, shape index: {}]
  %s6 = inlined_call_operand.vmem [shape: f32[32,16], index: 6, kind: input, shape index: {}]
  %s7 = inlined_call_operand.vmem [shape: f32[1,16], index: 7, kind: input, shape index: {}]
  %s8 = inlined_call_operand.vmem [shape: f32[8,16], index: 8, kind: input, shape index: {}]
  %s9 = inlined_call_operand.vmem [shape: f32[8,1], index: 9, kind: input, shape index: {}]
  %s10 = inlined_call_operand.vmem [shape: f32[32,9], index: 10, kind: input, shape index: {}]
  %s11 = inlined_call_operand.vmem [shape: f32[32,1], index: 11, kind: input, shape index: {}]
  %s12 = inlined_call_operand.hbm [shape: f32[1,1,8], index: 12, kind: output, shape index: {}]
  %s13 = sld [smem:[#allocation0]]
  $region70: #{tpu_custom_call.1} parent=0
    _
  %s15 = ssub.s32 1, %s13
  %s16 = scalar_select 0, %s15, %s13
  %17 = sst [smem:[#allocation2]] %s0
  $region1: #{tpu_custom_call.1} parent=0
    #allocation3 [shape = 'u8[32768]{0}', space=vmem, size = 0x8000, scoped, tag = 'input window, operand 2, single buffered']
    #allocation4 [shape = 's32[1]{0}', space=sflag, size = 0x4, scoped, tag = 'scoped memory for tpu_custom_call.1']
    #allocation5 [shape = 's32[1]{0}', space=sflag, size = 0x4, scoped, tag = 'scoped memory for tpu_custom_call.1']
    #allocation6 [shape = 'u8[32768]{0}', space=vmem, size = 0x8000, scoped, tag = 'input window, operand 3, single buffered']
    #allocation7 [shape = 's32[1]{0}', space=sflag, size = 0x4, scoped, tag = 'scoped memory for tpu_custom_call.1']
    #allocation8 [shape = 'u8[32768]{0}', space=vmem, size = 0x8000, scoped, tag = 'input window, operand 4, single buffered']
    #allocation9 [shape = 'u8[512]{0}', space=vmem, size = 0x400, scoped, tag = 'output window, operand 0, single buffered']
    %18 = vsyncpa [#allocation4], 0
    %19 = vsyncpa [#allocation7], 0
    %20 = vsyncpa [#allocation5], 0
    // Predicated region
    $region2: #{tpu_custom_call.1} parent=1 // pred_check
      _
    $region3: #{tpu_custom_call.1} parent=1 // pred_check_branch
      %22 = sbr.rel (0) target = $region5
    $region4: #{tpu_custom_call.1} parent=1 // pred_region
      _
    $region5: #{tpu_custom_call.1} parent=1 // pred_fallthru
      _
    // Predicated region
    $region6: #{tpu_custom_call.1} parent=1 // pred_check
      _
    $region7: #{tpu_custom_call.1} parent=1 // pred_check_branch
      %24 = sbr.rel (0) target = $region9
    $region8: #{tpu_custom_call.1} parent=1 // pred_region
      _
    $region9: #{tpu_custom_call.1} parent=1 // pred_fallthru
      _
    // Predicated region
    $region10: #{tpu_custom_call.1} parent=1 // pred_check
      _
    $region11: #{tpu_custom_call.1} parent=1 // pred_check_branch
      %26 = sbr.rel (0) target = $region13
    $region12: #{tpu_custom_call.1} parent=1 // pred_region
      %28 = vsyncadd [#allocation4], 0
      %s29 = sshll.u32 %s2, 4
      %s30 = int_to_ptr.hbm [resolvable:$true] %s29
      %s31 = sshll.u32 [#allocation3], 4
      %s32 = int_to_ptr.vmem [resolvable:$true] %s31
      %37 = dma.hbm_to_vmem [thread:$0]  %s30, 1024, %s32, [#allocation4], 128, 128, 8
    $region13: #{tpu_custom_call.1} parent=1 // pred_fallthru
      _
    // Predicated region
    $region14: #{tpu_custom_call.1} parent=1 // pred_check
      _
    $region15: #{tpu_custom_call.1} parent=1 // pred_check_branch
      %39 = sbr.rel (0) target = $region17
    $region16: #{tpu_custom_call.1} parent=1 // pred_region
      %41 = vsyncadd [#allocation7], 0
      %s42 = sshll.u32 %s3, 4
      %s43 = int_to_ptr.hbm [resolvable:$true] %s42
      %s44 = sshll.u32 [#allocation6], 4
      %s45 = int_to_ptr.vmem [resolvable:$true] %s44
      %50 = dma.hbm_to_vmem [thread:$0]  %s43, 1024, %s45, [#allocation7], 128, 128, 8
    $region17: #{tpu_custom_call.1} parent=1 // pred_fallthru
      _
    // Predicated region
    $region18: #{tpu_custom_call.1} parent=1 // pred_check
      _
    $region19: #{tpu_custom_call.1} parent=1 // pred_check_branch
      %52 = sbr.rel (0) target = $region21
    $region20: #{tpu_custom_call.1} parent=1 // pred_region
      %54 = vsyncadd [#allocation7], 0
      %s55 = sshll.u32 %s4, 4
      %s56 = int_to_ptr.hbm [resolvable:$true] %s55
      %s57 = sshll.u32 [#allocation8], 4
      %s58 = int_to_ptr.vmem [resolvable:$true] %s57
      %63 = dma.hbm_to_vmem [thread:$0]  %s56, 1024, %s58, [#allocation7], 128, 128, 8
    $region21: #{tpu_custom_call.1} parent=1 // pred_fallthru
      _
    // Predicated region
    $region22: #{tpu_custom_call.1} parent=1 // pred_check
      _
    $region23: #{tpu_custom_call.1} parent=1 // pred_check_branch
      %65 = sbr.rel (0) target = $region25
    $region24: #{tpu_custom_call.1} parent=1 // pred_region
      _
    $region25: #{tpu_custom_call.1} parent=1 // pred_fallthru
      _
    // Predicated region
    $region26: #{tpu_custom_call.1} parent=1 // pred_check
      _
    $region27: #{tpu_custom_call.1} parent=1 // pred_check_branch
      %67 = sbr.rel (0) target = $region29
    $region28: #{tpu_custom_call.1} parent=1 // pred_region
      _
    $region29: #{tpu_custom_call.1} parent=1 // pred_fallthru
      _
    // Predicated region
    $region30: #{tpu_custom_call.1} parent=1 // pred_check
      _
    $region31: #{tpu_custom_call.1} parent=1 // pred_check_branch
      %69 = sbr.rel (0) target = $region33
    $region32: #{tpu_custom_call.1} parent=1 // pred_region
      _
    $region33: #{tpu_custom_call.1} parent=1 // pred_fallthru
      _
    // Predicated region
    $region34: #{tpu_custom_call.1} parent=1 // pred_check
      _
    $region35: #{tpu_custom_call.1} parent=1 // pred_check_branch
      %71 = sbr.rel (0) target = $region37
    $region36: #{tpu_custom_call.1} parent=1 // pred_region
      _
    $region37: #{tpu_custom_call.1} parent=1 // pred_fallthru
      _
    // Predicated region
    $region38: #{tpu_custom_call.1} parent=1 // pred_check
      _
    $region39: #{tpu_custom_call.1} parent=1 // pred_check_branch
      %73 = sbr.rel (0) target = $region41
    $region40: #{tpu_custom_call.1} parent=1 // pred_region
      _
    $region41: #{tpu_custom_call.1} parent=1 // pred_fallthru
      _
    // Predicated region
    $region42: #{tpu_custom_call.1} parent=1 // pred_check
      _
    $region43: #{tpu_custom_call.1} parent=1 // pred_check_branch
      %75 = sbr.rel (0) target = $region45
    $region44: #{tpu_custom_call.1} parent=1 // pred_region
      _
    $region45: #{tpu_custom_call.1} parent=1 // pred_fallthru
      _
    // Predicated region
    $region46: #{tpu_custom_call.1} parent=1 // pred_check
      _
    $region47: #{tpu_custom_call.1} parent=1 // pred_check_branch
      %77 = sbr.rel (0) target = $region49
    $region48: #{tpu_custom_call.1} parent=1 // pred_region
      _
    $region49: #{tpu_custom_call.1} parent=1 // pred_fallthru
      _
    // Predicated region
    $region50: #{tpu_custom_call.1} parent=1 // pred_check
      _
    $region51: #{tpu_custom_call.1} parent=1 // pred_check_branch
      %79 = sbr.rel (0) target = $region53
    $region52: #{tpu_custom_call.1} parent=1 // pred_region
      %81 = dma.done [#allocation4], 1024
    $region53: #{tpu_custom_call.1} parent=1 // pred_fallthru
      _
    // Predicated region
    $region54: #{tpu_custom_call.1} parent=1 // pred_check
      _
    $region55: #{tpu_custom_call.1} parent=1 // pred_check_branch
      %83 = sbr.rel (0) target = $region57
    $region56: #{tpu_custom_call.1} parent=1 // pred_region
      %85 = dma.done [#allocation7], 1024
    $region57: #{tpu_custom_call.1} parent=1 // pred_fallthru
      _
    // Predicated region
    $region58: #{tpu_custom_call.1} parent=1 // pred_check
      _
    $region59: #{tpu_custom_call.1} parent=1 // pred_check_branch
      %87 = sbr.rel (0) target = $region61
    $region60: #{tpu_custom_call.1} parent=1 // pred_region
      %89 = dma.done [#allocation7], 1024
    $region61: #{tpu_custom_call.1} parent=1 // pred_fallthru
      _
    %v90 = vld [vmem:[%s6] sm:$0xff]
    %v91 = vld [vmem:[%s6 + $0x8] sm:$0xff]
    %v92 = vld [vmem:[%s6 + $0x10] sm:$0xff]
    %v93 = vld [vmem:[%s6 + $0x18] sm:$0xff]
    %v94 = vld [vmem:[%s5] sm:$0xff]
    %v95 = vld [vmem:[%s5 + $0x8] sm:$0xff]
    %v96 = vld [vmem:[%s5 + $0x10] sm:$0xff]
    %v97 = vld [vmem:[%s5 + $0x18] sm:$0xff]
    %s98 = sld [smem:[#allocation2]]
    %v99 = vstv %s98
    %v100 = vadd.f32 %v99, 0.0
    %v101 = vld [vmem:[%s1] sm:$0xff]
    %v102 = vld [vmem:[%s1 + $0x8] sm:$0xff]
    %v103 = vld [vmem:[%s1 + $0x10] sm:$0xff]
    %v104 = vld [vmem:[%s1 + $0x18] sm:$0xff]
    %v105 = vld [vmem:[%s1 + $0x20] sm:$0xff]
    %v106 = vld [vmem:[%s1 + $0x28] sm:$0xff]
    %v107 = vld [vmem:[%s1 + $0x30] sm:$0xff]
    %v108 = vld [vmem:[%s1 + $0x38] sm:$0xff]
    %vm109 = vcmask 261120
    %v111 = vsel %vm109, %v101, 0
    %v114 = vsel %vm109, %v102, 0
    %v117 = vsel %vm109, %v103, 0
    %v120 = vsel %vm109, %v104, 0
    %v123 = vsel %vm109, %v105, 0
    %v126 = vsel %vm109, %v106, 0
    %v129 = vsel %vm109, %v107, 0
    %v132 = vsel %vm109, %v108, 0
    %134 = vmatpush.msra.mxu0 0.0
    %135 = vmatpush.msra.mxu0 0.0
    %136 = vmatpush.msra.mxu0 0.0
    %137 = vmatpush.msra.mxu0 0.0
    %138 = vmatpush.msra.mxu0 0.0
    %139 = vmatpush.msra.mxu0 0.0
    %140 = vmatpush.msra.mxu0 0.0
    %141 = vmatpush.msra.mxu0 0.0
    %142 = vmatpush.msra.mxu0 0.0
    %143 = vmatpush.msra.mxu0 0.0
    %144 = vmatpush.msra.mxu0 0.0
    %145 = vmatpush.msra.mxu0 0.0
    %146 = vmatpush.msra.mxu0 %v93
    %147 = vmatpush.msra.mxu0 %v92
    %148 = vmatpush.msra.mxu0 %v91
    %149 = vmatpush.msra.mxu0 %v90
    %150 = vmatmul.f32.gmra.mxu0 %v111
    %v151 = vpop.f32.mrf.mxu0
    %v152 = vadd.f32 0.0, %v151
    %153 = vmatmul.f32.gmra.mxu0 %v114
    %v154 = vpop.f32.mrf.mxu0
    %v155 = vadd.f32 0.0, %v154
    %156 = vmatmul.f32.gmra.mxu0 %v117
    %v157 = vpop.f32.mrf.mxu0
    %v158 = vadd.f32 0.0, %v157
    %159 = vmatmul.f32.gmra.mxu0 %v120
    %v160 = vpop.f32.mrf.mxu0
    %v161 = vadd.f32 0.0, %v160
    %162 = vmatmul.f32.gmra.mxu0 %v123
    %v163 = vpop.f32.mrf.mxu0
    %v164 = vadd.f32 0.0, %v163
    %165 = vmatmul.f32.gmra.mxu0 %v126
    %v166 = vpop.f32.mrf.mxu0
    %v167 = vadd.f32 0.0, %v166
    %168 = vmatmul.f32.gmra.mxu0 %v129
    %v169 = vpop.f32.mrf.mxu0
    %v170 = vadd.f32 0.0, %v169
    %171 = vmatmul.f32.gmra.mxu0 %v132
    %v172 = vpop.f32.mrf.mxu0
    %v173 = vadd.f32 0.0, %v172
    %174 = vdwg.mxu0
    %vm175 = vcmask 130048
    %v176 = vsel %vm175, %v152, -inf
    %v177 = vrot.slane %v176, 4
    %v178 = vmax.f32 %v176, %v177
    %v179 = vrot.slane %v178, 2
    %v180 = vmax.f32 %v178, %v179
    %v181 = vrot.slane %v180, 1
    %v182 = vmax.f32 %v180, %v181
    %v183 = vsel %vm175, %v155, -inf
    %v184 = vrot.slane %v183, 4
    %v185 = vmax.f32 %v183, %v184
    %v186 = vrot.slane %v185, 2
    %v187 = vmax.f32 %v185, %v186
    %v188 = vrot.slane %v187, 1
    %v189 = vmax.f32 %v187, %v188
    %v190 = vsel %vm175, %v158, -inf
    %v191 = vrot.slane %v190, 4
    %v192 = vmax.f32 %v190, %v191
    %v193 = vrot.slane %v192, 2
    %v194 = vmax.f32 %v192, %v193
    %v195 = vrot.slane %v194, 1
    %v196 = vmax.f32 %v194, %v195
    %v197 = vsel %vm175, %v161, -inf
    %v198 = vrot.slane %v197, 4
    %v199 = vmax.f32 %v197, %v198
    %v200 = vrot.slane %v199, 2
    %v201 = vmax.f32 %v199, %v200
    %v202 = vrot.slane %v201, 1
    %v203 = vmax.f32 %v201, %v202
    %v204 = vsel %vm175, %v164, -inf
    %v205 = vrot.slane %v204, 4
    %v206 = vmax.f32 %v204, %v205
    %v207 = vrot.slane %v206, 2
    %v208 = vmax.f32 %v206, %v207
    %v209 = vrot.slane %v208, 1
    %v210 = vmax.f32 %v208, %v209
    %v211 = vsel %vm175, %v167, -inf
    %v212 = vrot.slane %v211, 4
    %v213 = vmax.f32 %v211, %v212
    %v214 = vrot.slane %v213, 2
    %v215 = vmax.f32 %v213, %v214
    %v216 = vrot.slane %v215, 1
    %v217 = vmax.f32 %v215, %v216
    %v218 = vsel %vm175, %v170, -inf
    %v219 = vrot.slane %v218, 4
    %v220 = vmax.f32 %v218, %v219
    %v221 = vrot.slane %v220, 2
    %v222 = vmax.f32 %v220, %v221
    %v223 = vrot.slane %v222, 1
    %v224 = vmax.f32 %v222, %v223
    %v225 = vsel %vm175, %v173, -inf
    %v226 = vrot.slane %v225, 4
    %v227 = vmax.f32 %v225, %v226
    %v228 = vrot.slane %v227, 2
    %v229 = vmax.f32 %v227, %v228
    %v230 = vrot.slane %v229, 1
    %v231 = vmax.f32 %v229, %v230
    %v232 = vmul.f32 %v101, %v94
    %v233 = vmul.f32 %v102, %v94
    %v234 = vmul.f32 %v103, %v94
    %v235 = vmul.f32 %v104, %v94
    %v236 = vmul.f32 %v105, %v94
    %v237 = vmul.f32 %v106, %v94
    %v238 = vmul.f32 %v107, %v94
    %v239 = vmul.f32 %v108, %v94
    %v240 = vsel %vm109, %v232, 0.0
    %241 = vadd.xlane.f32.xlu0 %v240
    %v242 = vpop.xlane.xlu0 %241
    %v243 = vsel %vm109, %v233, 0.0
    %244 = vadd.xlane.f32.xlu0 %v243
    %v245 = vpop.xlane.xlu0 %244
    %v246 = vsel %vm109, %v234, 0.0
    %247 = vadd.xlane.f32.xlu0 %v246
    %v248 = vpop.xlane.xlu0 %247
    %v249 = vsel %vm109, %v235, 0.0
    %250 = vadd.xlane.f32.xlu0 %v249
    %v251 = vpop.xlane.xlu0 %250
    %v252 = vsel %vm109, %v236, 0.0
    %253 = vadd.xlane.f32.xlu0 %v252
    %v254 = vpop.xlane.xlu0 %253
    %v255 = vsel %vm109, %v237, 0.0
    %256 = vadd.xlane.f32.xlu0 %v255
    %v257 = vpop.xlane.xlu0 %256
    %v258 = vsel %vm109, %v238, 0.0
    %259 = vadd.xlane.f32.xlu0 %v258
    %v260 = vpop.xlane.xlu0 %259
    %v261 = vsel %vm109, %v239, 0.0
    %262 = vadd.xlane.f32.xlu0 %v261
    %v263 = vpop.xlane.xlu0 %262
    %v264 = vrot.slane %v242, 4
    %v265 = vadd.f32 %v242, %v264
    %v266 = vrot.slane %v265, 2
    %v267 = vadd.f32 %v265, %v266
    %v268 = vrot.slane %v267, 1
    %v269 = vadd.f32 %v267, %v268
    %v270 = vrot.slane %v245, 4
    %v271 = vadd.f32 %v245, %v270
    %v272 = vrot.slane %v271, 2
    %v273 = vadd.f32 %v271, %v272
    %v274 = vrot.slane %v273, 1
    %v275 = vadd.f32 %v273, %v274
    %v276 = vrot.slane %v248, 4
    %v277 = vadd.f32 %v248, %v276
    %v278 = vrot.slane %v277, 2
    %v279 = vadd.f32 %v277, %v278
    %v280 = vrot.slane %v279, 1
    %v281 = vadd.f32 %v279, %v280
    %v282 = vrot.slane %v251, 4
    %v283 = vadd.f32 %v251, %v282
    %v284 = vrot.slane %v283, 2
    %v285 = vadd.f32 %v283, %v284
    %v286 = vrot.slane %v285, 1
    %v287 = vadd.f32 %v285, %v286
    %v288 = vrot.slane %v254, 4
    %v289 = vadd.f32 %v254, %v288
    %v290 = vrot.slane %v289, 2
    %v291 = vadd.f32 %v289, %v290
    %v292 = vrot.slane %v291, 1
    %v293 = vadd.f32 %v291, %v292
    %v294 = vrot.slane %v257, 4
    %v295 = vadd.f32 %v257, %v294
    %v296 = vrot.slane %v295, 2
    %v297 = vadd.f32 %v295, %v296
    %v298 = vrot.slane %v297, 1
    %v299 = vadd.f32 %v297, %v298
    %v300 = vrot.slane %v260, 4
    %v301 = vadd.f32 %v260, %v300
    %v302 = vrot.slane %v301, 2
    %v303 = vadd.f32 %v301, %v302
    %v304 = vrot.slane %v303, 1
    %v305 = vadd.f32 %v303, %v304
    %v306 = vrot.slane %v263, 4
    %v307 = vadd.f32 %v263, %v306
    %v308 = vrot.slane %v307, 2
    %v309 = vadd.f32 %v307, %v308
    %v310 = vrot.slane %v309, 1
    %v311 = vadd.f32 %v309, %v310
    %v312 = vadd.f32 %v100, %v269
    %v313 = vadd.f32 %v100, %v275
    %v314 = vadd.f32 %v100, %v281
    %v315 = vadd.f32 %v100, %v287
    %v316 = vadd.f32 %v100, %v293
    %v317 = vadd.f32 %v100, %v299
    %v318 = vadd.f32 %v100, %v305
    %v319 = vadd.f32 %v100, %v311
    %v320 = vld [vmem:[#allocation3] sm:$0xff]
    %v321 = vld [vmem:[#allocation3 + $0x8] sm:$0xff]
    %v322 = vld [vmem:[#allocation3 + $0x10] sm:$0xff]
    %v323 = vld [vmem:[#allocation3 + $0x18] sm:$0xff]
    %v324 = vld [vmem:[#allocation3 + $0x20] sm:$0xff]
    %v325 = vld [vmem:[#allocation3 + $0x28] sm:$0xff]
    %v326 = vld [vmem:[#allocation3 + $0x30] sm:$0xff]
    %v327 = vld [vmem:[#allocation3 + $0x38] sm:$0xff]
    %v329 = vsel %vm109, %v320, 0
    %v332 = vsel %vm109, %v321, 0
    %v335 = vsel %vm109, %v322, 0
    %v338 = vsel %vm109, %v323, 0
    %v341 = vsel %vm109, %v324, 0
    %v344 = vsel %vm109, %v325, 0
    %v347 = vsel %vm109, %v326, 0
    %v350 = vsel %vm109, %v327, 0
    %352 = vmatpush.msra.mxu0 0.0
    %353 = vmatpush.msra.mxu0 0.0
    %354 = vmatpush.msra.mxu0 0.0
    %355 = vmatpush.msra.mxu0 0.0
    %356 = vmatpush.msra.mxu0 0.0
    %357 = vmatpush.msra.mxu0 0.0
    %358 = vmatpush.msra.mxu0 0.0
    %359 = vmatpush.msra.mxu0 0.0
    %360 = vmatpush.msra.mxu0 0.0
    %361 = vmatpush.msra.mxu0 0.0
    %362 = vmatpush.msra.mxu0 0.0
    %363 = vmatpush.msra.mxu0 0.0
    %364 = vmatpush.msra.mxu0 %v93
    %365 = vmatpush.msra.mxu0 %v92
    %366 = vmatpush.msra.mxu0 %v91
    %367 = vmatpush.msra.mxu0 %v90
    %368 = vmatmul.f32.gmra.mxu0 %v329
    %v369 = vpop.f32.mrf.mxu0
    %v370 = vadd.f32 0.0, %v369
    %371 = vmatmul.f32.gmra.mxu0 %v332
    %v372 = vpop.f32.mrf.mxu0
    %v373 = vadd.f32 0.0, %v372
    %374 = vmatmul.f32.gmra.mxu0 %v335
    %v375 = vpop.f32.mrf.mxu0
    %v376 = vadd.f32 0.0, %v375
    %377 = vmatmul.f32.gmra.mxu0 %v338
    %v378 = vpop.f32.mrf.mxu0
    %v379 = vadd.f32 0.0, %v378
    %380 = vmatmul.f32.gmra.mxu0 %v341
    %v381 = vpop.f32.mrf.mxu0
    %v382 = vadd.f32 0.0, %v381
    %383 = vmatmul.f32.gmra.mxu0 %v344
    %v384 = vpop.f32.mrf.mxu0
    %v385 = vadd.f32 0.0, %v384
    %386 = vmatmul.f32.gmra.mxu0 %v347
    %v387 = vpop.f32.mrf.mxu0
    %v388 = vadd.f32 0.0, %v387
    %389 = vmatmul.f32.gmra.mxu0 %v350
    %v390 = vpop.f32.mrf.mxu0
    %v391 = vadd.f32 0.0, %v390
    %392 = vdwg.mxu0
    %v393 = vsel %vm175, %v370, -inf
    %v394 = vrot.slane %v393, 4
    %v395 = vmax.f32 %v393, %v394
    %v396 = vrot.slane %v395, 2
    %v397 = vmax.f32 %v395, %v396
    %v398 = vrot.slane %v397, 1
    %v399 = vmax.f32 %v397, %v398
    %v400 = vsel %vm175, %v373, -inf
    %v401 = vrot.slane %v400, 4
    %v402 = vmax.f32 %v400, %v401
    %v403 = vrot.slane %v402, 2
    %v404 = vmax.f32 %v402, %v403
    %v405 = vrot.slane %v404, 1
    %v406 = vmax.f32 %v404, %v405
    %v407 = vsel %vm175, %v376, -inf
    %v408 = vrot.slane %v407, 4
    %v409 = vmax.f32 %v407, %v408
    %v410 = vrot.slane %v409, 2
    %v411 = vmax.f32 %v409, %v410
    %v412 = vrot.slane %v411, 1
    %v413 = vmax.f32 %v411, %v412
    %v414 = vsel %vm175, %v379, -inf
    %v415 = vrot.slane %v414, 4
    %v416 = vmax.f32 %v414, %v415
    %v417 = vrot.slane %v416, 2
    %v418 = vmax.f32 %v416, %v417
    %v419 = vrot.slane %v418, 1
    %v420 = vmax.f32 %v418, %v419
    %v421 = vsel %vm175, %v382, -inf
    %v422 = vrot.slane %v421, 4
    %v423 = vmax.f32 %v421, %v422
    %v424 = vrot.slane %v423, 2
    %v425 = vmax.f32 %v423, %v424
    %v426 = vrot.slane %v425, 1
    %v427 = vmax.f32 %v425, %v426
    %v428 = vsel %vm175, %v385, -inf
    %v429 = vrot.slane %v428, 4
    %v430 = vmax.f32 %v428, %v429
    %v431 = vrot.slane %v430, 2
    %v432 = vmax.f32 %v430, %v431
    %v433 = vrot.slane %v432, 1
    %v434 = vmax.f32 %v432, %v433
    %v435 = vsel %vm175, %v388, -inf
    %v436 = vrot.slane %v435, 4
    %v437 = vmax.f32 %v435, %v436
    %v438 = vrot.slane %v437, 2
    %v439 = vmax.f32 %v437, %v438
    %v440 = vrot.slane %v439, 1
    %v441 = vmax.f32 %v439, %v440
    %v442 = vsel %vm175, %v391, -inf
    %v443 = vrot.slane %v442, 4
    %v444 = vmax.f32 %v442, %v443
    %v445 = vrot.slane %v444, 2
    %v446 = vmax.f32 %v444, %v445
    %v447 = vrot.slane %v446, 1
    %v448 = vmax.f32 %v446, %v447
    %v449 = vmax.f32 %v182, %v399
    %v450 = vmax.f32 %v189, %v406
    %v451 = vmax.f32 %v196, %v413
    %v452 = vmax.f32 %v203, %v420
    %v453 = vmax.f32 %v210, %v427
    %v454 = vmax.f32 %v217, %v434
    %v455 = vmax.f32 %v224, %v441
    %v456 = vmax.f32 %v231, %v448
    %v457 = vmul.f32 %v320, %v95
    %v458 = vmul.f32 %v321, %v95
    %v459 = vmul.f32 %v322, %v95
    %v460 = vmul.f32 %v323, %v95
    %v461 = vmul.f32 %v324, %v95
    %v462 = vmul.f32 %v325, %v95
    %v463 = vmul.f32 %v326, %v95
    %v464 = vmul.f32 %v327, %v95
    %v465 = vsel %vm109, %v457, 0.0
    %466 = vadd.xlane.f32.xlu0 %v465
    %v467 = vpop.xlane.xlu0 %466
    %v468 = vsel %vm109, %v458, 0.0
    %469 = vadd.xlane.f32.xlu0 %v468
    %v470 = vpop.xlane.xlu0 %469
    %v471 = vsel %vm109, %v459, 0.0
    %472 = vadd.xlane.f32.xlu0 %v471
    %v473 = vpop.xlane.xlu0 %472
    %v474 = vsel %vm109, %v460, 0.0
    %475 = vadd.xlane.f32.xlu0 %v474
    %v476 = vpop.xlane.xlu0 %475
    %v477 = vsel %vm109, %v461, 0.0
    %478 = vadd.xlane.f32.xlu0 %v477
    %v479 = vpop.xlane.xlu0 %478
    %v480 = vsel %vm109, %v462, 0.0
    %481 = vadd.xlane.f32.xlu0 %v480
    %v482 = vpop.xlane.xlu0 %481
    %v483 = vsel %vm109, %v463, 0.0
    %484 = vadd.xlane.f32.xlu0 %v483
    %v485 = vpop.xlane.xlu0 %484
    %v486 = vsel %vm109, %v464, 0.0
    %487 = vadd.xlane.f32.xlu0 %v486
    %v488 = vpop.xlane.xlu0 %487
    %v489 = vrot.slane %v467, 4
    %v490 = vadd.f32 %v467, %v489
    %v491 = vrot.slane %v490, 2
    %v492 = vadd.f32 %v490, %v491
    %v493 = vrot.slane %v492, 1
    %v494 = vadd.f32 %v492, %v493
    %v495 = vrot.slane %v470, 4
    %v496 = vadd.f32 %v470, %v495
    %v497 = vrot.slane %v496, 2
    %v498 = vadd.f32 %v496, %v497
    %v499 = vrot.slane %v498, 1
    %v500 = vadd.f32 %v498, %v499
    %v501 = vrot.slane %v473, 4
    %v502 = vadd.f32 %v473, %v501
    %v503 = vrot.slane %v502, 2
    %v504 = vadd.f32 %v502, %v503
    %v505 = vrot.slane %v504, 1
    %v506 = vadd.f32 %v504, %v505
    %v507 = vrot.slane %v476, 4
    %v508 = vadd.f32 %v476, %v507
    %v509 = vrot.slane %v508, 2
    %v510 = vadd.f32 %v508, %v509
    %v511 = vrot.slane %v510, 1
    %v512 = vadd.f32 %v510, %v511
    %v513 = vrot.slane %v479, 4
    %v514 = vadd.f32 %v479, %v513
    %v515 = vrot.slane %v514, 2
    %v516 = vadd.f32 %v514, %v515
    %v517 = vrot.slane %v516, 1
    %v518 = vadd.f32 %v516, %v517
    %v519 = vrot.slane %v482, 4
    %v520 = vadd.f32 %v482, %v519
    %v521 = vrot.slane %v520, 2
    %v522 = vadd.f32 %v520, %v521
    %v523 = vrot.slane %v522, 1
    %v524 = vadd.f32 %v522, %v523
    %v525 = vrot.slane %v485, 4
    %v526 = vadd.f32 %v485, %v525
    %v527 = vrot.slane %v526, 2
    %v528 = vadd.f32 %v526, %v527
    %v529 = vrot.slane %v528, 1
    %v530 = vadd.f32 %v528, %v529
    %v531 = vrot.slane %v488, 4
    %v532 = vadd.f32 %v488, %v531
    %v533 = vrot.slane %v532, 2
    %v534 = vadd.f32 %v532, %v533
    %v535 = vrot.slane %v534, 1
    %v536 = vadd.f32 %v534, %v535
    %v537 = vadd.f32 %v312, %v494
    %v538 = vadd.f32 %v313, %v500
    %v539 = vadd.f32 %v314, %v506
    %v540 = vadd.f32 %v315, %v512
    %v541 = vadd.f32 %v316, %v518
    %v542 = vadd.f32 %v317, %v524
    %v543 = vadd.f32 %v318, %v530
    %v544 = vadd.f32 %v319, %v536
    %v545 = vld [vmem:[#allocation6] sm:$0xff]
    %v546 = vld [vmem:[#allocation6 + $0x8] sm:$0xff]
    %v547 = vld [vmem:[#allocation6 + $0x10] sm:$0xff]
    %v548 = vld [vmem:[#allocation6 + $0x18] sm:$0xff]
    %v549 = vld [vmem:[#allocation6 + $0x20] sm:$0xff]
    %v550 = vld [vmem:[#allocation6 + $0x28] sm:$0xff]
    %v551 = vld [vmem:[#allocation6 + $0x30] sm:$0xff]
    %v552 = vld [vmem:[#allocation6 + $0x38] sm:$0xff]
    %v554 = vsel %vm109, %v545, 0
    %v557 = vsel %vm109, %v546, 0
    %v560 = vsel %vm109, %v547, 0
    %v563 = vsel %vm109, %v548, 0
    %v566 = vsel %vm109, %v549, 0
    %v569 = vsel %vm109, %v550, 0
    %v572 = vsel %vm109, %v551, 0
    %v575 = vsel %vm109, %v552, 0
    %577 = vmatpush.msra.mxu0 0.0
    %578 = vmatpush.msra.mxu0 0.0
    %579 = vmatpush.msra.mxu0 0.0
    %580 = vmatpush.msra.mxu0 0.0
    %581 = vmatpush.msra.mxu0 0.0
    %582 = vmatpush.msra.mxu0 0.0
    %583 = vmatpush.msra.mxu0 0.0
    %584 = vmatpush.msra.mxu0 0.0
    %585 = vmatpush.msra.mxu0 0.0
    %586 = vmatpush.msra.mxu0 0.0
    %587 = vmatpush.msra.mxu0 0.0
    %588 = vmatpush.msra.mxu0 0.0
    %589 = vmatpush.msra.mxu0 %v93
    %590 = vmatpush.msra.mxu0 %v92
    %591 = vmatpush.msra.mxu0 %v91
    %592 = vmatpush.msra.mxu0 %v90
    %593 = vmatmul.f32.gmra.mxu0 %v554
    %v594 = vpop.f32.mrf.mxu0
    %v595 = vadd.f32 0.0, %v594
    %596 = vmatmul.f32.gmra.mxu0 %v557
    %v597 = vpop.f32.mrf.mxu0
    %v598 = vadd.f32 0.0, %v597
    %599 = vmatmul.f32.gmra.mxu0 %v560
    %v600 = vpop.f32.mrf.mxu0
    %v601 = vadd.f32 0.0, %v600
    %602 = vmatmul.f32.gmra.mxu0 %v563
    %v603 = vpop.f32.mrf.mxu0
    %v604 = vadd.f32 0.0, %v603
    %605 = vmatmul.f32.gmra.mxu0 %v566
    %v606 = vpop.f32.mrf.mxu0
    %v607 = vadd.f32 0.0, %v606
    %608 = vmatmul.f32.gmra.mxu0 %v569
    %v609 = vpop.f32.mrf.mxu0
    %v610 = vadd.f32 0.0, %v609
    %611 = vmatmul.f32.gmra.mxu0 %v572
    %v612 = vpop.f32.mrf.mxu0
    %v613 = vadd.f32 0.0, %v612
    %614 = vmatmul.f32.gmra.mxu0 %v575
    %v615 = vpop.f32.mrf.mxu0
    %v616 = vadd.f32 0.0, %v615
    %617 = vdwg.mxu0
    %v618 = vsel %vm175, %v595, -inf
    %v619 = vrot.slane %v618, 4
    %v620 = vmax.f32 %v618, %v619
    %v621 = vrot.slane %v620, 2
    %v622 = vmax.f32 %v620, %v621
    %v623 = vrot.slane %v622, 1
    %v624 = vmax.f32 %v622, %v623
    %v625 = vsel %vm175, %v598, -inf
    %v626 = vrot.slane %v625, 4
    %v627 = vmax.f32 %v625, %v626
    %v628 = vrot.slane %v627, 2
    %v629 = vmax.f32 %v627, %v628
    %v630 = vrot.slane %v629, 1
    %v631 = vmax.f32 %v629, %v630
    %v632 = vsel %vm175, %v601, -inf
    %v633 = vrot.slane %v632, 4
    %v634 = vmax.f32 %v632, %v633
    %v635 = vrot.slane %v634, 2
    %v636 = vmax.f32 %v634, %v635
    %v637 = vrot.slane %v636, 1
    %v638 = vmax.f32 %v636, %v637
    %v639 = vsel %vm175, %v604, -inf
    %v640 = vrot.slane %v639, 4
    %v641 = vmax.f32 %v639, %v640
    %v642 = vrot.slane %v641, 2
    %v643 = vmax.f32 %v641, %v642
    %v644 = vrot.slane %v643, 1
    %v645 = vmax.f32 %v643, %v644
    %v646 = vsel %vm175, %v607, -inf
    %v647 = vrot.slane %v646, 4
    %v648 = vmax.f32 %v646, %v647
    %v649 = vrot.slane %v648, 2
    %v650 = vmax.f32 %v648, %v649
    %v651 = vrot.slane %v650, 1
    %v652 = vmax.f32 %v650, %v651
    %v653 = vsel %vm175, %v610, -inf
    %v654 = vrot.slane %v653, 4
    %v655 = vmax.f32 %v653, %v654
    %v656 = vrot.slane %v655, 2
    %v657 = vmax.f32 %v655, %v656
    %v658 = vrot.slane %v657, 1
    %v659 = vmax.f32 %v657, %v658
    %v660 = vsel %vm175, %v613, -inf
    %v661 = vrot.slane %v660, 4
    %v662 = vmax.f32 %v660, %v661
    %v663 = vrot.slane %v662, 2
    %v664 = vmax.f32 %v662, %v663
    %v665 = vrot.slane %v664, 1
    %v666 = vmax.f32 %v664, %v665
    %v667 = vsel %vm175, %v616, -inf
    %v668 = vrot.slane %v667, 4
    %v669 = vmax.f32 %v667, %v668
    %v670 = vrot.slane %v669, 2
    %v671 = vmax.f32 %v669, %v670
    %v672 = vrot.slane %v671, 1
    %v673 = vmax.f32 %v671, %v672
    %v674 = vmax.f32 %v449, %v624
    %v675 = vmax.f32 %v450, %v631
    %v676 = vmax.f32 %v451, %v638
    %v677 = vmax.f32 %v452, %v645
    %v678 = vmax.f32 %v453, %v652
    %v679 = vmax.f32 %v454, %v659
    %v680 = vmax.f32 %v455, %v666
    %v681 = vmax.f32 %v456, %v673
    %v682 = vmul.f32 %v545, %v96
    %v683 = vmul.f32 %v546, %v96
    %v684 = vmul.f32 %v547, %v96
    %v685 = vmul.f32 %v548, %v96
    %v686 = vmul.f32 %v549, %v96
    %v687 = vmul.f32 %v550, %v96
    %v688 = vmul.f32 %v551, %v96
    %v689 = vmul.f32 %v552, %v96
    %v690 = vsel %vm109, %v682, 0.0
    %691 = vadd.xlane.f32.xlu0 %v690
    %v692 = vpop.xlane.xlu0 %691
    %v693 = vsel %vm109, %v683, 0.0
    %694 = vadd.xlane.f32.xlu0 %v693
    %v695 = vpop.xlane.xlu0 %694
    %v696 = vsel %vm109, %v684, 0.0
    %697 = vadd.xlane.f32.xlu0 %v696
    %v698 = vpop.xlane.xlu0 %697
    %v699 = vsel %vm109, %v685, 0.0
    %700 = vadd.xlane.f32.xlu0 %v699
    %v701 = vpop.xlane.xlu0 %700
    %v702 = vsel %vm109, %v686, 0.0
    %703 = vadd.xlane.f32.xlu0 %v702
    %v704 = vpop.xlane.xlu0 %703
    %v705 = vsel %vm109, %v687, 0.0
    %706 = vadd.xlane.f32.xlu0 %v705
    %v707 = vpop.xlane.xlu0 %706
    %v708 = vsel %vm109, %v688, 0.0
    %709 = vadd.xlane.f32.xlu0 %v708
    %v710 = vpop.xlane.xlu0 %709
    %v711 = vsel %vm109, %v689, 0.0
    %712 = vadd.xlane.f32.xlu0 %v711
    %v713 = vpop.xlane.xlu0 %712
    %v714 = vrot.slane %v692, 4
    %v715 = vadd.f32 %v692, %v714
    %v716 = vrot.slane %v715, 2
    %v717 = vadd.f32 %v715, %v716
    %v718 = vrot.slane %v717, 1
    %v719 = vadd.f32 %v717, %v718
    %v720 = vrot.slane %v695, 4
    %v721 = vadd.f32 %v695, %v720
    %v722 = vrot.slane %v721, 2
    %v723 = vadd.f32 %v721, %v722
    %v724 = vrot.slane %v723, 1
    %v725 = vadd.f32 %v723, %v724
    %v726 = vrot.slane %v698, 4
    %v727 = vadd.f32 %v698, %v726
    %v728 = vrot.slane %v727, 2
    %v729 = vadd.f32 %v727, %v728
    %v730 = vrot.slane %v729, 1
    %v731 = vadd.f32 %v729, %v730
    %v732 = vrot.slane %v701, 4
    %v733 = vadd.f32 %v701, %v732
    %v734 = vrot.slane %v733, 2
    %v735 = vadd.f32 %v733, %v734
    %v736 = vrot.slane %v735, 1
    %v737 = vadd.f32 %v735, %v736
    %v738 = vrot.slane %v704, 4
    %v739 = vadd.f32 %v704, %v738
    %v740 = vrot.slane %v739, 2
    %v741 = vadd.f32 %v739, %v740
    %v742 = vrot.slane %v741, 1
    %v743 = vadd.f32 %v741, %v742
    %v744 = vrot.slane %v707, 4
    %v745 = vadd.f32 %v707, %v744
    %v746 = vrot.slane %v745, 2
    %v747 = vadd.f32 %v745, %v746
    %v748 = vrot.slane %v747, 1
    %v749 = vadd.f32 %v747, %v748
    %v750 = vrot.slane %v710, 4
    %v751 = vadd.f32 %v710, %v750
    %v752 = vrot.slane %v751, 2
    %v753 = vadd.f32 %v751, %v752
    %v754 = vrot.slane %v753, 1
    %v755 = vadd.f32 %v753, %v754
    %v756 = vrot.slane %v713, 4
    %v757 = vadd.f32 %v713, %v756
    %v758 = vrot.slane %v757, 2
    %v759 = vadd.f32 %v757, %v758
    %v760 = vrot.slane %v759, 1
    %v761 = vadd.f32 %v759, %v760
    %v762 = vadd.f32 %v537, %v719
    %v763 = vadd.f32 %v538, %v725
    %v764 = vadd.f32 %v539, %v731
    %v765 = vadd.f32 %v540, %v737
    %v766 = vadd.f32 %v541, %v743
    %v767 = vadd.f32 %v542, %v749
    %v768 = vadd.f32 %v543, %v755
    %v769 = vadd.f32 %v544, %v761
    %v770 = vld [vmem:[#allocation8] sm:$0xff]
    %v771 = vld [vmem:[#allocation8 + $0x8] sm:$0xff]
    %v772 = vld [vmem:[#allocation8 + $0x10] sm:$0xff]
    %v773 = vld [vmem:[#allocation8 + $0x18] sm:$0xff]
    %v774 = vld [vmem:[#allocation8 + $0x20] sm:$0xff]
    %v775 = vld [vmem:[#allocation8 + $0x28] sm:$0xff]
    %v776 = vld [vmem:[#allocation8 + $0x30] sm:$0xff]
    %v777 = vld [vmem:[#allocation8 + $0x38] sm:$0xff]
    %v779 = vsel %vm109, %v770, 0
    %v782 = vsel %vm109, %v771, 0
    %v785 = vsel %vm109, %v772, 0
    %v788 = vsel %vm109, %v773, 0
    %v791 = vsel %vm109, %v774, 0
    %v794 = vsel %vm109, %v775, 0
    %v797 = vsel %vm109, %v776, 0
    %v800 = vsel %vm109, %v777, 0
    %802 = vmatpush.msra.mxu0 0.0
    %803 = vmatpush.msra.mxu0 0.0
    %804 = vmatpush.msra.mxu0 0.0
    %805 = vmatpush.msra.mxu0 0.0
    %806 = vmatpush.msra.mxu0 0.0
    %807 = vmatpush.msra.mxu0 0.0
    %808 = vmatpush.msra.mxu0 0.0
    %809 = vmatpush.msra.mxu0 0.0
    %810 = vmatpush.msra.mxu0 0.0
    %811 = vmatpush.msra.mxu0 0.0
    %812 = vmatpush.msra.mxu0 0.0
    %813 = vmatpush.msra.mxu0 0.0
    %814 = vmatpush.msra.mxu0 %v93
    %815 = vmatpush.msra.mxu0 %v92
    %816 = vmatpush.msra.mxu0 %v91
    %817 = vmatpush.msra.mxu0 %v90
    %818 = vmatmul.f32.gmra.mxu0 %v779
    %v819 = vpop.f32.mrf.mxu0
    %v820 = vadd.f32 0.0, %v819
    %821 = vmatmul.f32.gmra.mxu0 %v782
    %v822 = vpop.f32.mrf.mxu0
    %v823 = vadd.f32 0.0, %v822
    %824 = vmatmul.f32.gmra.mxu0 %v785
    %v825 = vpop.f32.mrf.mxu0
    %v826 = vadd.f32 0.0, %v825
    %827 = vmatmul.f32.gmra.mxu0 %v788
    %v828 = vpop.f32.mrf.mxu0
    %v829 = vadd.f32 0.0, %v828
    %830 = vmatmul.f32.gmra.mxu0 %v791
    %v831 = vpop.f32.mrf.mxu0
    %v832 = vadd.f32 0.0, %v831
    %833 = vmatmul.f32.gmra.mxu0 %v794
    %v834 = vpop.f32.mrf.mxu0
    %v835 = vadd.f32 0.0, %v834
    %836 = vmatmul.f32.gmra.mxu0 %v797
    %v837 = vpop.f32.mrf.mxu0
    %v838 = vadd.f32 0.0, %v837
    %839 = vmatmul.f32.gmra.mxu0 %v800
    %v840 = vpop.f32.mrf.mxu0
    %v841 = vadd.f32 0.0, %v840
    %842 = vdwg.mxu0
    %v843 = vsel %vm175, %v820, -inf
    %v844 = vrot.slane %v843, 4
    %v845 = vmax.f32 %v843, %v844
    %v846 = vrot.slane %v845, 2
    %v847 = vmax.f32 %v845, %v846
    %v848 = vrot.slane %v847, 1
    %v849 = vmax.f32 %v847, %v848
    %v850 = vsel %vm175, %v823, -inf
    %v851 = vrot.slane %v850, 4
    %v852 = vmax.f32 %v850, %v851
    %v853 = vrot.slane %v852, 2
    %v854 = vmax.f32 %v852, %v853
    %v855 = vrot.slane %v854, 1
    %v856 = vmax.f32 %v854, %v855
    %v857 = vsel %vm175, %v826, -inf
    %v858 = vrot.slane %v857, 4
    %v859 = vmax.f32 %v857, %v858
    %v860 = vrot.slane %v859, 2
    %v861 = vmax.f32 %v859, %v860
    %v862 = vrot.slane %v861, 1
    %v863 = vmax.f32 %v861, %v862
    %v864 = vsel %vm175, %v829, -inf
    %v865 = vrot.slane %v864, 4
    %v866 = vmax.f32 %v864, %v865
    %v867 = vrot.slane %v866, 2
    %v868 = vmax.f32 %v866, %v867
    %v869 = vrot.slane %v868, 1
    %v870 = vmax.f32 %v868, %v869
    %v871 = vsel %vm175, %v832, -inf
    %v872 = vrot.slane %v871, 4
    %v873 = vmax.f32 %v871, %v872
    %v874 = vrot.slane %v873, 2
    %v875 = vmax.f32 %v873, %v874
    %v876 = vrot.slane %v875, 1
    %v877 = vmax.f32 %v875, %v876
    %v878 = vsel %vm175, %v835, -inf
    %v879 = vrot.slane %v878, 4
    %v880 = vmax.f32 %v878, %v879
    %v881 = vrot.slane %v880, 2
    %v882 = vmax.f32 %v880, %v881
    %v883 = vrot.slane %v882, 1
    %v884 = vmax.f32 %v882, %v883
    %v885 = vsel %vm175, %v838, -inf
    %v886 = vrot.slane %v885, 4
    %v887 = vmax.f32 %v885, %v886
    %v888 = vrot.slane %v887, 2
    %v889 = vmax.f32 %v887, %v888
    %v890 = vrot.slane %v889, 1
    %v891 = vmax.f32 %v889, %v890
    %v892 = vsel %vm175, %v841, -inf
    %v893 = vrot.slane %v892, 4
    %v894 = vmax.f32 %v892, %v893
    %v895 = vrot.slane %v894, 2
    %v896 = vmax.f32 %v894, %v895
    %v897 = vrot.slane %v896, 1
    %v898 = vmax.f32 %v896, %v897
    %v899 = vmax.f32 %v674, %v849
    %v900 = vmax.f32 %v675, %v856
    %v901 = vmax.f32 %v676, %v863
    %v902 = vmax.f32 %v677, %v870
    %v903 = vmax.f32 %v678, %v877
    %v904 = vmax.f32 %v679, %v884
    %v905 = vmax.f32 %v680, %v891
    %v906 = vmax.f32 %v681, %v898
    %v907 = vmul.f32 %v770, %v97
    %v908 = vmul.f32 %v771, %v97
    %v909 = vmul.f32 %v772, %v97
    %v910 = vmul.f32 %v773, %v97
    %v911 = vmul.f32 %v774, %v97
    %v912 = vmul.f32 %v775, %v97
    %v913 = vmul.f32 %v776, %v97
    %v914 = vmul.f32 %v777, %v97
    %v915 = vsel %vm109, %v907, 0.0
    %916 = vadd.xlane.f32.xlu0 %v915
    %v917 = vpop.xlane.xlu0 %916
    %v918 = vsel %vm109, %v908, 0.0
    %919 = vadd.xlane.f32.xlu0 %v918
    %v920 = vpop.xlane.xlu0 %919
    %v921 = vsel %vm109, %v909, 0.0
    %922 = vadd.xlane.f32.xlu0 %v921
    %v923 = vpop.xlane.xlu0 %922
    %v924 = vsel %vm109, %v910, 0.0
    %925 = vadd.xlane.f32.xlu0 %v924
    %v926 = vpop.xlane.xlu0 %925
    %v927 = vsel %vm109, %v911, 0.0
    %928 = vadd.xlane.f32.xlu0 %v927
    %v929 = vpop.xlane.xlu0 %928
    %v930 = vsel %vm109, %v912, 0.0
    %931 = vadd.xlane.f32.xlu0 %v930
    %v932 = vpop.xlane.xlu0 %931
    %v933 = vsel %vm109, %v913, 0.0
    %934 = vadd.xlane.f32.xlu0 %v933
    %v935 = vpop.xlane.xlu0 %934
    %v936 = vsel %vm109, %v914, 0.0
    %937 = vadd.xlane.f32.xlu0 %v936
    %v938 = vpop.xlane.xlu0 %937
    %v939 = vrot.slane %v917, 4
    %v940 = vadd.f32 %v917, %v939
    %v941 = vrot.slane %v940, 2
    %v942 = vadd.f32 %v940, %v941
    %v943 = vrot.slane %v942, 1
    %v944 = vadd.f32 %v942, %v943
    %v945 = vrot.slane %v920, 4
    %v946 = vadd.f32 %v920, %v945
    %v947 = vrot.slane %v946, 2
    %v948 = vadd.f32 %v946, %v947
    %v949 = vrot.slane %v948, 1
    %v950 = vadd.f32 %v948, %v949
    %v951 = vrot.slane %v923, 4
    %v952 = vadd.f32 %v923, %v951
    %v953 = vrot.slane %v952, 2
    %v954 = vadd.f32 %v952, %v953
    %v955 = vrot.slane %v954, 1
    %v956 = vadd.f32 %v954, %v955
    %v957 = vrot.slane %v926, 4
    %v958 = vadd.f32 %v926, %v957
    %v959 = vrot.slane %v958, 2
    %v960 = vadd.f32 %v958, %v959
    %v961 = vrot.slane %v960, 1
    %v962 = vadd.f32 %v960, %v961
    %v963 = vrot.slane %v929, 4
    %v964 = vadd.f32 %v929, %v963
    %v965 = vrot.slane %v964, 2
    %v966 = vadd.f32 %v964, %v965
    %v967 = vrot.slane %v966, 1
    %v968 = vadd.f32 %v966, %v967
    %v969 = vrot.slane %v932, 4
    %v970 = vadd.f32 %v932, %v969
    %v971 = vrot.slane %v970, 2
    %v972 = vadd.f32 %v970, %v971
    %v973 = vrot.slane %v972, 1
    %v974 = vadd.f32 %v972, %v973
    %v975 = vrot.slane %v935, 4
    %v976 = vadd.f32 %v935, %v975
    %v977 = vrot.slane %v976, 2
    %v978 = vadd.f32 %v976, %v977
    %v979 = vrot.slane %v978, 1
    %v980 = vadd.f32 %v978, %v979
    %v981 = vrot.slane %v938, 4
    %v982 = vadd.f32 %v938, %v981
    %v983 = vrot.slane %v982, 2
    %v984 = vadd.f32 %v982, %v983
    %v985 = vrot.slane %v984, 1
    %v986 = vadd.f32 %v984, %v985
    %v987 = vadd.f32 %v762, %v944
    %v988 = vadd.f32 %v763, %v950
    %v989 = vadd.f32 %v764, %v956
    %v990 = vadd.f32 %v765, %v962
    %v991 = vadd.f32 %v766, %v968
    %v992 = vadd.f32 %v767, %v974
    %v993 = vadd.f32 %v768, %v980
    %v994 = vadd.f32 %v769, %v986
    %v995 = vxor.u32 %v987, 2147483648
    %v996 = vxor.u32 %v988, 2147483648
    %v997 = vxor.u32 %v989, 2147483648
    %v998 = vxor.u32 %v990, 2147483648
    %v999 = vxor.u32 %v991, 2147483648
    %v1000 = vxor.u32 %v992, 2147483648
    %v1001 = vxor.u32 %v993, 2147483648
    %v1002 = vxor.u32 %v994, 2147483648
    %v1003 = vmul.f32 %v995, 1.442695
    %v1004 = vpow.pop %v1003
    %v1005 = vmul.f32 %v996, 1.442695
    %v1006 = vpow.pop %v1005
    %v1007 = vmul.f32 %v997, 1.442695
    %v1008 = vpow.pop %v1007
    %v1009 = vmul.f32 %v998, 1.442695
    %v1010 = vpow.pop %v1009
    %v1011 = vmul.f32 %v999, 1.442695
    %v1012 = vpow.pop %v1011
    %v1013 = vmul.f32 %v1000, 1.442695
    %v1014 = vpow.pop %v1013
    %v1015 = vmul.f32 %v1001, 1.442695
    %v1016 = vpow.pop %v1015
    %v1017 = vmul.f32 %v1002, 1.442695
    %v1018 = vpow.pop %v1017
    %v1019 = vadd.f32 %v1004, 1.0
    %v1020 = vadd.f32 %v1006, 1.0
    %v1021 = vadd.f32 %v1008, 1.0
    %v1022 = vadd.f32 %v1010, 1.0
    %v1023 = vadd.f32 %v1012, 1.0
    %v1024 = vadd.f32 %v1014, 1.0
    %v1025 = vadd.f32 %v1016, 1.0
    %v1026 = vadd.f32 %v1018, 1.0
    %v1027 = vrcp.pop %v1019
    %v1028 = vmul.f32 %v1019, %v1027
    %v1029 = vsub.f32 1.0, %v1028
    %v1030 = vmul.f32 %v1027, %v1029
    %v1031 = vadd.f32 %v1027, %v1030
    %vm1032 = vweird.f32 %v1019
    %vm1033 = vweird.f32 %v1027
    %vm1034 = vmor %vm1032, %vm1033
    %v1035 = vsel %vm1034, %v1027, %v1031
    %v1036 = vand.u32 2147483647, %v1019
    %vm1037 = vcmp.eq.f32.partialorder %v1036, 8.507059e+37
    %v1038 = vand.u32 %v1019, 2147483648
    %v1039 = vor.u32 1.1754944e-38, %v1038
    %v1040 = vsel %vm1037, %v1039, %v1035
    %v1041 = vmul.f32 1.0, %v1040
    %v1042 = vrcp.pop %v1020
    %v1043 = vmul.f32 %v1020, %v1042
    %v1044 = vsub.f32 1.0, %v1043
    %v1045 = vmul.f32 %v1042, %v1044
    %v1046 = vadd.f32 %v1042, %v1045
    %vm1047 = vweird.f32 %v1020
    %vm1048 = vweird.f32 %v1042
    %vm1049 = vmor %vm1047, %vm1048
    %v1050 = vsel %vm1049, %v1042, %v1046
    %v1051 = vand.u32 2147483647, %v1020
    %vm1052 = vcmp.eq.f32.partialorder %v1051, 8.507059e+37
    %v1053 = vand.u32 %v1020, 2147483648
    %v1054 = vor.u32 1.1754944e-38, %v1053
    %v1055 = vsel %vm1052, %v1054, %v1050
    %v1056 = vmul.f32 1.0, %v1055
    %v1057 = vrcp.pop %v1021
    %v1058 = vmul.f32 %v1021, %v1057
    %v1059 = vsub.f32 1.0, %v1058
    %v1060 = vmul.f32 %v1057, %v1059
    %v1061 = vadd.f32 %v1057, %v1060
    %vm1062 = vweird.f32 %v1021
    %vm1063 = vweird.f32 %v1057
    %vm1064 = vmor %vm1062, %vm1063
    %v1065 = vsel %vm1064, %v1057, %v1061
    %v1066 = vand.u32 2147483647, %v1021
    %vm1067 = vcmp.eq.f32.partialorder %v1066, 8.507059e+37
    %v1068 = vand.u32 %v1021, 2147483648
    %v1069 = vor.u32 1.1754944e-38, %v1068
    %v1070 = vsel %vm1067, %v1069, %v1065
    %v1071 = vmul.f32 1.0, %v1070
    %v1072 = vrcp.pop %v1022
    %v1073 = vmul.f32 %v1022, %v1072
    %v1074 = vsub.f32 1.0, %v1073
    %v1075 = vmul.f32 %v1072, %v1074
    %v1076 = vadd.f32 %v1072, %v1075
    %vm1077 = vweird.f32 %v1022
    %vm1078 = vweird.f32 %v1072
    %vm1079 = vmor %vm1077, %vm1078
    %v1080 = vsel %vm1079, %v1072, %v1076
    %v1081 = vand.u32 2147483647, %v1022
    %vm1082 = vcmp.eq.f32.partialorder %v1081, 8.507059e+37
    %v1083 = vand.u32 %v1022, 2147483648
    %v1084 = vor.u32 1.1754944e-38, %v1083
    %v1085 = vsel %vm1082, %v1084, %v1080
    %v1086 = vmul.f32 1.0, %v1085
    %v1087 = vrcp.pop %v1023
    %v1088 = vmul.f32 %v1023, %v1087
    %v1089 = vsub.f32 1.0, %v1088
    %v1090 = vmul.f32 %v1087, %v1089
    %v1091 = vadd.f32 %v1087, %v1090
    %vm1092 = vweird.f32 %v1023
    %vm1093 = vweird.f32 %v1087
    %vm1094 = vmor %vm1092, %vm1093
    %v1095 = vsel %vm1094, %v1087, %v1091
    %v1096 = vand.u32 2147483647, %v1023
    %vm1097 = vcmp.eq.f32.partialorder %v1096, 8.507059e+37
    %v1098 = vand.u32 %v1023, 2147483648
    %v1099 = vor.u32 1.1754944e-38, %v1098
    %v1100 = vsel %vm1097, %v1099, %v1095
    %v1101 = vmul.f32 1.0, %v1100
    %v1102 = vrcp.pop %v1024
    %v1103 = vmul.f32 %v1024, %v1102
    %v1104 = vsub.f32 1.0, %v1103
    %v1105 = vmul.f32 %v1102, %v1104
    %v1106 = vadd.f32 %v1102, %v1105
    %vm1107 = vweird.f32 %v1024
    %vm1108 = vweird.f32 %v1102
    %vm1109 = vmor %vm1107, %vm1108
    %v1110 = vsel %vm1109, %v1102, %v1106
    %v1111 = vand.u32 2147483647, %v1024
    %vm1112 = vcmp.eq.f32.partialorder %v1111, 8.507059e+37
    %v1113 = vand.u32 %v1024, 2147483648
    %v1114 = vor.u32 1.1754944e-38, %v1113
    %v1115 = vsel %vm1112, %v1114, %v1110
    %v1116 = vmul.f32 1.0, %v1115
    %v1117 = vrcp.pop %v1025
    %v1118 = vmul.f32 %v1025, %v1117
    %v1119 = vsub.f32 1.0, %v1118
    %v1120 = vmul.f32 %v1117, %v1119
    %v1121 = vadd.f32 %v1117, %v1120
    %vm1122 = vweird.f32 %v1025
    %vm1123 = vweird.f32 %v1117
    %vm1124 = vmor %vm1122, %vm1123
    %v1125 = vsel %vm1124, %v1117, %v1121
    %v1126 = vand.u32 2147483647, %v1025
    %vm1127 = vcmp.eq.f32.partialorder %v1126, 8.507059e+37
    %v1128 = vand.u32 %v1025, 2147483648
    %v1129 = vor.u32 1.1754944e-38, %v1128
    %v1130 = vsel %vm1127, %v1129, %v1125
    %v1131 = vmul.f32 1.0, %v1130
    %v1132 = vrcp.pop %v1026
    %v1133 = vmul.f32 %v1026, %v1132
    %v1134 = vsub.f32 1.0, %v1133
    %v1135 = vmul.f32 %v1132, %v1134
    %v1136 = vadd.f32 %v1132, %v1135
    %vm1137 = vweird.f32 %v1026
    %vm1138 = vweird.f32 %v1132
    %vm1139 = vmor %vm1137, %vm1138
    %v1140 = vsel %vm1139, %v1132, %v1136
    %v1141 = vand.u32 2147483647, %v1026
    %vm1142 = vcmp.eq.f32.partialorder %v1141, 8.507059e+37
    %v1143 = vand.u32 %v1026, 2147483648
    %v1144 = vor.u32 1.1754944e-38, %v1143
    %v1145 = vsel %vm1142, %v1144, %v1140
    %v1146 = vmul.f32 1.0, %v1145
    %v1147 = vmul.f32 %v1041, %v899
    %v1148 = vmul.f32 %v1056, %v900
    %v1149 = vmul.f32 %v1071, %v901
    %v1150 = vmul.f32 %v1086, %v902
    %v1151 = vmul.f32 %v1101, %v903
    %v1152 = vmul.f32 %v1116, %v904
    %v1153 = vmul.f32 %v1131, %v905
    %v1154 = vmul.f32 %v1146, %v906
    %v1155 = vld [vmem:[%s7] sm:$0x1]
    %v1157 = vperm.slane %v1155, 0
    %v1159 = vadd.f32 %v1147, %v1157
    %v1160 = vadd.f32 %v1148, %v1157
    %v1161 = vadd.f32 %v1149, %v1157
    %v1162 = vadd.f32 %v1150, %v1157
    %v1163 = vadd.f32 %v1151, %v1157
    %v1164 = vadd.f32 %v1152, %v1157
    %v1165 = vadd.f32 %v1153, %v1157
    %v1166 = vadd.f32 %v1154, %v1157
    %v1167 = vtanh.pop %v1159
    %v1168 = vtanh.pop %v1160
    %v1169 = vtanh.pop %v1161
    %v1170 = vtanh.pop %v1162
    %v1171 = vtanh.pop %v1163
    %v1172 = vtanh.pop %v1164
    %v1173 = vtanh.pop %v1165
    %v1174 = vtanh.pop %v1166
    %v1175 = vmax.f32 %v1167, 0.0
    %v1176 = vmax.f32 %v1168, 0.0
    %v1177 = vmax.f32 %v1169, 0.0
    %v1178 = vmax.f32 %v1170, 0.0
    %v1179 = vmax.f32 %v1171, 0.0
    %v1180 = vmax.f32 %v1172, 0.0
    %v1181 = vmax.f32 %v1173, 0.0
    %v1182 = vmax.f32 %v1174, 0.0
    %v1183 = vld [vmem:[%s8] sm:$0xff]
    %v1192 = vrot.slane %v1176, 7
    %vm1193 = vcmask 1041409
    %v1194 = vsel %vm1193, %v1192, %v1175
    %v1195 = vrot.slane %v1177, 6
    %vm1196 = vcmask 1042434
    %v1197 = vsel %vm1196, %v1195, %v1194
    %v1198 = vrot.slane %v1178, 5
    %vm1199 = vcmask 1043459
    %v1200 = vsel %vm1199, %v1198, %v1197
    %v1201 = vrot.slane %v1179, 4
    %vm1202 = vcmask 1044484
    %v1203 = vsel %vm1202, %v1201, %v1200
    %v1204 = vrot.slane %v1180, 3
    %vm1205 = vcmask 1045509
    %v1206 = vsel %vm1205, %v1204, %v1203
    %v1207 = vrot.slane %v1181, 2
    %vm1208 = vcmask 1046534
    %v1209 = vsel %vm1208, %v1207, %v1206
    %v1210 = vrot.slane %v1182, 1
    %vm1211 = vcmask 1047559
    %v1212 = vsel %vm1211, %v1210, %v1209
    %1215 = vrot.lane.b32.xlu0 %v1183, 16
    %v1216 = vpop.permute.xlu0 %1215
    %v1218 = vsel %vm175, %v1212, %v1216
    %v1219 = vld [vmem:[%s10] sm:$0xff]
    %v1220 = vld [vmem:[%s10 + $0x8] sm:$0xff]
    %v1221 = vld [vmem:[%s10 + $0x10] sm:$0xff]
    %v1222 = vld [vmem:[%s10 + $0x18] sm:$0xff]
    %v1224 = vsel %vm109, %v1218, 0
    %1226 = vmatpush.msra.mxu0 0.0
    %1227 = vmatpush.msra.mxu0 0.0
    %1228 = vmatpush.msra.mxu0 0.0
    %1229 = vmatpush.msra.mxu0 0.0
    %1230 = vmatpush.msra.mxu0 0.0
    %1231 = vmatpush.msra.mxu0 0.0
    %1232 = vmatpush.msra.mxu0 0.0
    %1233 = vmatpush.msra.mxu0 0.0
    %1234 = vmatpush.msra.mxu0 0.0
    %1235 = vmatpush.msra.mxu0 0.0
    %1236 = vmatpush.msra.mxu0 0.0
    %1237 = vmatpush.msra.mxu0 0.0
    %1238 = vmatpush.msra.mxu0 %v1222
    %1239 = vmatpush.msra.mxu0 %v1221
    %1240 = vmatpush.msra.mxu0 %v1220
    %1241 = vmatpush.msra.mxu0 %v1219
    %1242 = vmatmul.f32.gmra.mxu0 %v1224
    %v1243 = vpop.f32.mrf.mxu0
    %v1244 = vadd.f32 0.0, %v1243
    %1245 = vdwg.mxu0
    %v1246 = vmul.f32 %v1244, %v1244
    %vm1247 = vcmask 72704
    %v1248 = vsel %vm1247, %v1246, 0.0
    %1249 = vadd.xlane.f32.xlu0 %v1248
    %v1250 = vpop.xlane.xlu0 %1249
    %v1251 = vsub.f32 %v1250, %v1246
    %v1252 = vmul.f32 %v1218, %v1218
    %v1253 = vld [vmem:[%s11] sm:$0xff]
    %v1254 = vld [vmem:[%s11 + $0x8] sm:$0xff]
    %v1255 = vld [vmem:[%s11 + $0x10] sm:$0xff]
    %v1256 = vld [vmem:[%s11 + $0x18] sm:$0xff]
    %v1258 = vsel %vm109, %v1252, 0
    %1260 = vmatpush.msra.mxu0 0.0
    %1261 = vmatpush.msra.mxu0 0.0
    %1262 = vmatpush.msra.mxu0 0.0
    %1263 = vmatpush.msra.mxu0 0.0
    %1264 = vmatpush.msra.mxu0 0.0
    %1265 = vmatpush.msra.mxu0 0.0
    %1266 = vmatpush.msra.mxu0 0.0
    %1267 = vmatpush.msra.mxu0 0.0
    %1268 = vmatpush.msra.mxu0 0.0
    %1269 = vmatpush.msra.mxu0 0.0
    %1270 = vmatpush.msra.mxu0 0.0
    %1271 = vmatpush.msra.mxu0 0.0
    %1272 = vmatpush.msra.mxu0 %v1256
    %1273 = vmatpush.msra.mxu0 %v1255
    %1274 = vmatpush.msra.mxu0 %v1254
    %1275 = vmatpush.msra.mxu0 %v1253
    %1276 = vmatmul.f32.gmra.mxu0 %v1258
    %v1277 = vpop.f32.mrf.mxu0
    %v1278 = vadd.f32 0.0, %v1277
    %1279 = vdwg.mxu0
    %v1280 = vsub.f32 %v1251, %v1278
    %v1281 = vmul.f32 %v1280, 0.5
    %v1282 = vadd.f32 %v1244, %v1281
    %v1283 = vld [vmem:[%s9] sm:$0xff]
    %v1284 = vadd.f32 %v1282, %v1283
    %v1285 = vlaneseq
    %v1286 = vshrl.u32 %v1285, 7
    %v1287 = vlaneseq
    %v1288 = vand.u32 %v1287, 127
    %vm1289 = vcmp.eq.s32.totalorder %v1286, %v1288
    %1291 = vset.pattern.permute.xlu0 0
    %1292 = vperm.xlu0 %1291, %v1284
    %v1293 = vpop.permute.xlu0 %1292
    %v1295 = vsel %vm1289, %v1293, 0.0
    %vm1296 = vcmask 64512
    %v1297 = vsel %vm1296, %v1295, 0.0
    %v1298 = vrot.slane %v1297, 4
    %v1299 = vadd.f32 %v1297, %v1298
    %v1300 = vrot.slane %v1299, 2
    %v1301 = vadd.f32 %v1299, %v1300
    %v1302 = vrot.slane %v1301, 1
    %v1303 = vadd.f32 %v1301, %v1302
    %vm1304 = vcmask 57344
    %1305 = vst.msk [vmem:[#allocation9] sm:$0x1] %vm1304, %v1303
    // Predicated region
    $region62: #{tpu_custom_call.1} parent=1 // pred_check
      _
    $region63: #{tpu_custom_call.1} parent=1 // pred_check_branch
      %1307 = sbr.rel (0) target = $region65
    $region64: #{tpu_custom_call.1} parent=1 // pred_region
      %1309 = vsyncadd [#allocation5], 0
      %s1311 = sshll.u32 [#allocation9], 4
      %s1312 = int_to_ptr.vmem [resolvable:$true] %s1311
      %s1313 = sshll.u32 %s12, 4
      %s1314 = int_to_ptr.hbm [resolvable:$true] %s1313
      %1316 = dma.vmem_to_hbm [thread:$0]  %s1312, 16, %s1314, [#allocation5]
    $region65: #{tpu_custom_call.1} parent=1 // pred_fallthru
      _
    // Predicated region
    $region66: #{tpu_custom_call.1} parent=1 // pred_check
      _
    $region67: #{tpu_custom_call.1} parent=1 // pred_check_branch
      %1318 = sbr.rel (0) target = $region69
    $region68: #{tpu_custom_call.1} parent=1 // pred_region
      %1320 = dma.done [#allocation5], 16
    $region69: #{tpu_custom_call.1} parent=1 // pred_fallthru
      _
    %1321 = vsyncpa [#allocation4], 1
    %1322 = vsyncpa [#allocation7], 1
    %1323 = vsyncpa [#allocation5], 1

</llo_original>
